<compile_context>
chip_gen: v7x
topology: tpu7x:2x2x1
jax: 0.10.0
libtpu: 0.0.40
codegen_flags: <defaults>
</compile_context>

<pallas_src>
import functools

import jax
import jax.numpy as jnp
from jax.experimental import pallas as pl
from jax.experimental.pallas import tpu as pltpu


def _conv_out(size, k, stride):
    return (size - k) // stride + 1


def _vmem_limit_bytes():
    """~3/4 of this chip's VMEM (v5e/v6e: 96 MiB of 128; v7x: 48 MiB of 64),
    with a v7x-safe 48 MiB fallback if the query is unavailable."""
    try:
        cap = int(getattr(pltpu.get_tpu_info(), "vmem_capacity_bytes", 0) or 0)
    except Exception:
        cap = 0
    if cap <= 0:
        cap = 64 * 1024 * 1024
    return int(min(cap * 3 // 4, 96 * 1024 * 1024))


# ----------------------------- fused Pallas kernel ---------------------------
def _dqn_kernel(x1_ref, w1_ref, b1_ref, w2_ref, b2_ref, w3_ref, b3_ref,
                wf1_ref, bf1_ref, wf2_ref, bf2_ref, o_ref, *,
                BB, QH, QW, OH2, OW2, OH3, OW3, K2, K3):
    f32, bf16 = jnp.float32, jnp.bfloat16

    # ---- conv1: one MXU matmul over the polyphase-ordered im2col rows -------
    # Row layout (per batch block): conv1 output position (h1, w1), sample b
    # lives at row ((((h1%2)*2 + w1%2)*QH + h1//2)*QW + w1//2)*BB + b.
    h1 = jnp.dot(x1_ref[...], w1_ref[...], preferred_element_type=f32)
    h1 = jnp.maximum(h1 + b1_ref[...], 0.0).astype(bf16)   # cast ONCE  [4*QH*QW*BB, C1]

    # ---- conv2 (k=4, stride=2) via polyphase decomposition: ONE wide-K dot ---
    # conv1 position (2*oh2+i, 2*ow2+j) == parity (i%2, j%2), quotient
    # (oh2+i//2, ow2+j//2): for fixed (i, j) and output row oh2 the needed
    # conv1 rows form ONE contiguous block of length OW2*BB.  The 16 tap blocks
    # are concatenated along K (matching w2's (kh, kw, c_in) row order) and the
    # OH2 row blocks along M, turning 16*OH2 tiny K=C1 dots into a single
    # [OH2*OW2*BB, 16*C1] x [16*C1, C2] MXU matmul.
    row_blocks = []
    for oh2 in range(OH2):
        taps = []
        for i in range(K2):
            ri, qi = i % 2, i // 2
            for j in range(K2):
                rj, qj = j % 2, j // 2
                start = (((ri * 2 + rj) * QH + (oh2 + qi)) * QW + qj) * BB
                taps.append(h1[start:start + OW2 * BB, :])
        row_blocks.append(jnp.concatenate(taps, axis=-1))    # [OW2*BB, 16*C1]
    x2 = jnp.concatenate(row_blocks, axis=0)                 # [OH2*OW2*BB, 16*C1]
    h2 = jnp.dot(x2, w2_ref[...], preferred_element_type=f32)
    h2 = jnp.maximum(h2 + b2_ref[...], 0.0).astype(bf16)     # [OH2*OW2*BB, C2]

    # ---- conv3 (k=3, stride=1): same trick, one K=9*C2 matmul ----------------
    row_blocks = []
    for oh3 in range(OH3):
        taps = []
        for i in range(K3):
            for j in range(K3):
                start = ((oh3 + i) * OW2 + j) * BB
                taps.append(h2[start:start + OW3 * BB, :])
        row_blocks.append(jnp.concatenate(taps, axis=-1))    # [OW3*BB, 9*C2]
    x3 = jnp.concatenate(row_blocks, axis=0)                 # [OH3*OW3*BB, 9*C2]
    h3 = jnp.dot(x3, w3_ref[...], preferred_element_type=f32)
    h3 = jnp.maximum(h3 + b3_ref[...], 0.0).astype(bf16)     # [OH3*OW3*BB, C3]

    # ---- fc1: one lane-concat relayout (p, b, c) -> (b, p*c), single dot -----
    # (weights pre-permuted to (h3, w3, c) row order in the wrapper)
    P = OH3 * OW3
    xf = jnp.concatenate([h3[p * BB:(p + 1) * BB, :] for p in range(P)],
                         axis=-1)                             # [BB, P*C3]
    a1 = jnp.dot(xf, wf1_ref[...], preferred_element_type=f32)
    a1 = jnp.maximum(a1 + bf1_ref[...], 0.0).astype(bf16)     # [BB, FH]

    # ---- fc2 (N padded to a multiple of 128 -> unmasked lane-dense store) ----
    out = jnp.dot(a1, wf2_ref[...], preferred_element_type=f32) + bf2_ref[...]
    o_ref[...] = out.astype(o_ref.dtype)


# ------------------------------ wrapper glue ---------------------------------
def _im2col_conv1_polyphase(x, kh, kw, stride, BB):
    """NCHW input -> conv1 im2col matrix (bf16).
    Rows ordered (batch_block, parity_h, parity_w, qh, qw, batch_in_block),
    features ordered (c, kh, kw) (matches conv1_w.reshape(O, C*kh*kw)).
    Casts to bf16 FIRST and uses a single fused permute (review items)."""
    x = x.astype(jnp.bfloat16)
    Bp, C, H, W = x.shape
    OH = _conv_out(H, kh, stride)
    OW = _conv_out(W, kw, stride)
    QH, QW = OH // 2, OW // 2
    G = Bp // BB
    cols = []
    for i in range(kh):
        for j in range(kw):
            cols.append(x[:, :, i:i + stride * (OH - 1) + 1:stride,
                             j:j + stride * (OW - 1) + 1:stride])
    p = jnp.stack(cols, axis=-1)                    # [Bp, C, OH, OW, kh*kw]
    K1 = C * kh * kw
    # (g, b, c, qh, ph, qw, pw, k) -> (g, ph, pw, qh, qw, b, c, k): one permute
    p = p.reshape(G, BB, C, QH, 2, QW, 2, kh * kw)
    p = p.transpose(0, 4, 6, 3, 5, 1, 2, 7)
    return p.reshape(G * 4 * QH * QW * BB, K1)


def prepare_params(params, input_dims):
    """One-time repack: bf16 matmul-layout weights permuted to match the
    in-kernel activation layout; fc2 lane-padded to a multiple of 128."""
    C, H, W = input_dims
    OH1, OW1 = _conv_out(H, 8, 4), _conv_out(W, 8, 4)
    OH2, OW2 = _conv_out(OH1, 4, 2), _conv_out(OW1, 4, 2)
    OH3, OW3 = _conv_out(OH2, 3, 1), _conv_out(OW2, 3, 1)
    bf16, f32 = jnp.bfloat16, jnp.float32

    w1, w2, w3 = params["conv1_w"], params["conv2_w"], params["conv3_w"]
    O1, O2, O3 = w1.shape[0], w2.shape[0], w3.shape[0]
    wf1, wf2 = params["fc1_w"], params["fc2_w"]
    FH, A = wf2.shape
    A_pad = ((A + 127) // 128) * 128

    return {
        # conv1: rows (c, kh, kw) — matches wrapper im2col feature order.
        "w1": w1.reshape(O1, -1).T.astype(bf16),
        "b1": params["conv1_b"].reshape(1, -1).astype(f32),
        # conv2/conv3: rows (kh, kw, c_in) — matches in-kernel tap-concat order.
        "w2": w2.transpose(2, 3, 1, 0).reshape(-1, O2).astype(bf16),
        "b2": params["conv2_b"].reshape(1, -1).astype(f32),
        "w3": w3.transpose(2, 3, 1, 0).reshape(-1, O3).astype(bf16),
        "b3": params["conv3_b"].reshape(1, -1).astype(f32),
        # fc1: absorb PyTorch's NCHW flatten (c, h3, w3) -> (h3, w3, c).
        "wf1": wf1.reshape(O3, OH3, OW3, FH).transpose(1, 2, 0, 3)
                  .reshape(OH3 * OW3 * O3, FH).astype(bf16),
        "bf1": params["fc1_b"].reshape(1, -1).astype(f32),
        # fc2: pad N up to 128 lanes for an unmasked final store.
        "wf2": jnp.pad(wf2, ((0, 0), (0, A_pad - A))).astype(bf16),
        "bf2": jnp.pad(params["fc2_b"], (0, A_pad - A)).reshape(1, -1).astype(f32),
    }


def dqn_forward(state, packed, *, num_actions):
    """state: [B, C, H, W] float32 -> actions: [B, num_actions] float32."""
    B, C, H, W = state.shape
    OH1, OW1 = _conv_out(H, 8, 4), _conv_out(W, 8, 4)
    OH2, OW2 = _conv_out(OH1, 4, 2), _conv_out(OW1, 4, 2)
    OH3, OW3 = _conv_out(OH2, 3, 1), _conv_out(OW2, 3, 1)
    assert OH3 >= 1 and OW3 >= 1, "input too small for the DQN conv stack"
    assert OH1 % 2 == 0 and OW1 % 2 == 0, "fused conv2 path needs even conv1 output"
    QH, QW = OH1 // 2, OW1 // 2

    K1, C1 = packed["w1"].shape
    C2 = packed["w2"].shape[1]
    C3 = packed["w3"].shape[1]
    FH = packed["wf1"].shape[1]
    A_pad = packed["wf2"].shape[1]

    # Batch-block selection:
    #   * tiny eval batches (B<=8): one block with the whole batch.
    #   * real batches: BB up to 32 (sized so double-buffered im2col + weights
    #     + intermediates fit v7x's 64 MiB per-TC VMEM; v5e/v6e have 128 MiB
    #     headroom), and at least 2 grid blocks so the "parallel" axis shards
    #     across v7x's two TensorCores and pipelines the im2col DMA.
    if B <= 8:
        BB = B
    else:
        BB = min(32, ((-(-B // 2)) + 7) // 8 * 8)
    G = -(-B // BB)
    Bp = G * BB
    if Bp != B:
        state = jnp.pad(state, ((0, Bp - B), (0, 0), (0, 0), (0, 0)))

    # TODO(synk): longer term, move conv1 patch extraction into the kernel
    # (per-tap DMA slices of the raw input) so the 4x-expanded im2col matrix
    # never round-trips through HBM.
    cols1 = _im2col_conv1_polyphase(state, 8, 8, 4, BB)
    M1b = 4 * QH * QW * BB                          # im2col rows per batch block

    kernel = functools.partial(
        _dqn_kernel, BB=BB, QH=QH, QW=QW, OH2=OH2, OW2=OW2, OH3=OH3, OW3=OW3,
        K2=4, K3=3)

    flops = 2 * Bp * (OH1 * OW1 * K1 * C1
                      + OH2 * OW2 * 16 * C1 * C2
                      + OH3 * OW3 * 9 * C2 * C3
                      + OH3 * OW3 * C3 * FH
                      + FH * A_pad)
    bytes_accessed = (cols1.size * 2
                      + sum(int(v.size) * v.dtype.itemsize for v in packed.values())
                      + Bp * A_pad * 4)

    out = pl.pallas_call(
        kernel,
        out_shape=jax.ShapeDtypeStruct((Bp, A_pad), jnp.float32),
        grid=(G,),
        in_specs=[
            pl.BlockSpec((M1b, K1), lambda g: (g, 0)),            # im2col: blocked over batch
            pl.BlockSpec((K1, C1), lambda g: (0, 0)),             # all weights: VMEM-resident
            pl.BlockSpec((1, C1), lambda g: (0, 0)),
            pl.BlockSpec((16 * C1, C2), lambda g: (0, 0)),
            pl.BlockSpec((1, C2), lambda g: (0, 0)),
            pl.BlockSpec((9 * C2, C3), lambda g: (0, 0)),
            pl.BlockSpec((1, C3), lambda g: (0, 0)),
            pl.BlockSpec((OH3 * OW3 * C3, FH), lambda g: (0, 0)),
            pl.BlockSpec((1, FH), lambda g: (0, 0)),
            pl.BlockSpec((FH, A_pad), lambda g: (0, 0)),
            pl.BlockSpec((1, A_pad), lambda g: (0, 0)),
        ],
        out_specs=pl.BlockSpec((BB, A_pad), lambda g: (g, 0)),
        compiler_params=pltpu.CompilerParams(
            dimension_semantics=("parallel",),
            vmem_limit_bytes=_vmem_limit_bytes(),
        ),
        cost_estimate=pl.CostEstimate(flops=flops, transcendentals=0,
                                      bytes_accessed=bytes_accessed),
    )(cols1, packed["w1"], packed["b1"], packed["w2"], packed["b2"],
      packed["w3"], packed["b3"], packed["wf1"], packed["bf1"],
      packed["wf2"], packed["bf2"])
    return out[:B, :num_actions]


# ------------------------------ param init -----------------------------------
def init_params(key, in_channels, H, W, num_actions):
    h1, w1 = _conv_out(H, 8, 4), _conv_out(W, 8, 4)
    h2, w2 = _conv_out(h1, 4, 2), _conv_out(w1, 4, 2)
    h3, w3 = _conv_out(h2, 3, 1), _conv_out(w2, 3, 1)
    fc_input_dims = 64 * h3 * w3

    keys = jax.random.split(key, 10)

    def u(k, shape, fan_in):
        bound = 1.0 / jnp.sqrt(float(fan_in))
        return jax.random.uniform(k, shape, jnp.float32, -bound, bound)

    return {
        "conv1_w": u(keys[0], (32, in_channels, 8, 8), in_channels * 64),
        "conv1_b": u(keys[1], (32,), in_channels * 64),
        "conv2_w": u(keys[2], (64, 32, 4, 4), 32 * 16),
        "conv2_b": u(keys[3], (64,), 32 * 16),
        "conv3_w": u(keys[4], (64, 64, 3, 3), 64 * 9),
        "conv3_b": u(keys[5], (64,), 64 * 9),
        "fc1_w": u(keys[6], (fc_input_dims, 512), fc_input_dims),
        "fc1_b": u(keys[7], (512,), fc_input_dims),
        "fc2_w": u(keys[8], (512, num_actions), 512),
        "fc2_b": u(keys[9], (num_actions,), 512),
    }


# ------------------------------ reference check ------------------------------
def _reference_forward(state, params):
    def conv(x, w, b, st):
        y = jax.lax.conv_general_dilated(
            x, w, window_strides=(st, st), padding="VALID",
            dimension_numbers=("NCHW", "OIHW", "NCHW"))
        return jax.nn.relu(y + b[None, :, None, None])
    c1 = conv(state, params["conv1_w"], params["conv1_b"], 4)
    c2 = conv(c1, params["conv2_w"], params["conv2_b"], 2)
    c3 = conv(c2, params["conv3_w"], params["conv3_b"], 1)
    flat = c3.reshape(c3.shape[0], -1)
    fc1 = jax.nn.relu(flat @ params["fc1_w"] + params["fc1_b"])
    return fc1 @ params["fc2_w"] + params["fc2_b"]


if __name__ == "__main__":
    # Smallest spatial size the DQN conv stack supports is 36x36
    # (conv1 k8 s4 -> 8, conv2 k4 s2 -> 3, conv3 k3 s1 -> 1).
    C, H, W = 4, 36, 36
    num_actions = 6

    key = jax.random.PRNGKey(0)
    k_x1, k_x2, k_p = jax.random.split(key, 3)
    params = init_params(k_p, C, H, W, num_actions)
    packed = prepare_params(params, (C, H, W))      # one-time weight repack

    fwd = jax.jit(functools.partial(dqn_forward, num_actions=num_actions))

    # ---- small eval batch: single batch block ----
    B = 2
    state = jax.random.normal(k_x1, (B, C, H, W), jnp.float32)
    actions = jax.block_until_ready(fwd(state, packed))
    ref = _reference_forward(state, params)
    assert actions.shape == (B, num_actions)
    max_err = float(jnp.max(jnp.abs(actions - ref)))
    # bf16 MXU operands with f32 accumulation: a few 1e-3 of absolute error.
    assert jnp.allclose(actions, ref, atol=2e-2, rtol=2e-2), (
        f"mismatch vs reference (max abs err {max_err})")

    # ---- batched path: BB>8 selection, >=2 grid blocks, batch padding ----
    B2 = 18
    state2 = jax.random.normal(k_x2, (B2, C, H, W), jnp.float32)
    actions2 = jax.block_until_ready(fwd(state2, packed))
    ref2 = _reference_forward(state2, params)
    assert actions2.shape == (B2, num_actions)
    max_err2 = float(jnp.max(jnp.abs(actions2 - ref2)))
    assert jnp.allclose(actions2, ref2, atol=2e-2, rtol=2e-2), (
        f"mismatch vs reference (batched, max abs err {max_err2})")

    print("KERNEL_OK")
</pallas_src>

<mosaic_0001>
module attributes {stable_mosaic.version = 11 : i64} {
  func.func @_dqn_kernel(%arg0: i32, %arg1: memref<128x256xbf16, #tpu.memory_space<vmem>>, %arg2: memref<256x32xbf16, #tpu.memory_space<vmem>>, %arg3: memref<1x32xf32, #tpu.memory_space<vmem>>, %arg4: memref<512x64xbf16, #tpu.memory_space<vmem>>, %arg5: memref<1x64xf32, #tpu.memory_space<vmem>>, %arg6: memref<576x64xbf16, #tpu.memory_space<vmem>>, %arg7: memref<1x64xf32, #tpu.memory_space<vmem>>, %arg8: memref<64x512xbf16, #tpu.memory_space<vmem>>, %arg9: memref<1x512xf32, #tpu.memory_space<vmem>>, %arg10: memref<512x128xbf16, #tpu.memory_space<vmem>>, %arg11: memref<1x128xf32, #tpu.memory_space<vmem>>, %arg12: memref<2x128xf32, #tpu.memory_space<vmem>>) attributes {dimension_semantics = [#tpu.dimension_semantics<parallel>], iteration_bounds = array<i64: 1>, scalar_prefetch = 0 : i64, scratch_operands = 0 : i64, tpu.core_type = #tpu.core_type<tc>, window_params = [{transform_indices = @transform_0, window_bounds = array<i64: 128, 256>}, {pipeline_mode = #tpu.pipeline_mode<synchronous>, transform_indices = @transform_1, window_bounds = array<i64: 256, 32>}, {pipeline_mode = #tpu.pipeline_mode<synchronous>, transform_indices = @transform_2, window_bounds = array<i64: 1, 32>}, {pipeline_mode = #tpu.pipeline_mode<synchronous>, transform_indices = @transform_3, window_bounds = array<i64: 512, 64>}, {pipeline_mode = #tpu.pipeline_mode<synchronous>, transform_indices = @transform_4, window_bounds = array<i64: 1, 64>}, {pipeline_mode = #tpu.pipeline_mode<synchronous>, transform_indices = @transform_5, window_bounds = array<i64: 576, 64>}, {pipeline_mode = #tpu.pipeline_mode<synchronous>, transform_indices = @transform_6, window_bounds = array<i64: 1, 64>}, {pipeline_mode = #tpu.pipeline_mode<synchronous>, transform_indices = @transform_7, window_bounds = array<i64: 64, 512>}, {pipeline_mode = #tpu.pipeline_mode<synchronous>, transform_indices = @transform_8, window_bounds = array<i64: 1, 512>}, {pipeline_mode = #tpu.pipeline_mode<synchronous>, transform_indices = @transform_9, window_bounds = array<i64: 512, 128>}, {pipeline_mode = #tpu.pipeline_mode<synchronous>, transform_indices = @transform_10, window_bounds = array<i64: 1, 128>}, {transform_indices = @transform_11, window_bounds = array<i64: 2, 128>}]} {
    %c0 = arith.constant 0 : index
    %c0_0 = arith.constant 0 : index
    %0 = vector.load %arg1[%c0, %c0_0] : memref<128x256xbf16, #tpu.memory_space<vmem>>, vector<128x256xbf16>
    %c0_1 = arith.constant 0 : index
    %c0_2 = arith.constant 0 : index
    %1 = vector.load %arg2[%c0_1, %c0_2] : memref<256x32xbf16, #tpu.memory_space<vmem>>, vector<256x32xbf16>
    %cst = arith.constant dense<0.000000e+00> : vector<128x32xf32>
    %2 = tpu.matmul %0, %1, %cst {dimension_numbers = #tpu.dot_dimension_numbers<[1], [0], [0], [1], [0, 0, 1, 1], [], []>} : vector<128x256xbf16>, vector<256x32xbf16>, vector<128x32xf32> -> vector<128x32xf32>
    %c0_3 = arith.constant 0 : index
    %c0_4 = arith.constant 0 : index
    %3 = vector.load %arg3[%c0_3, %c0_4] : memref<1x32xf32, #tpu.memory_space<vmem>>, vector<1x32xf32>
    %4 = vector.broadcast %3 : vector<1x32xf32> to vector<128x32xf32>
    %5 = arith.addf %2, %4 : vector<128x32xf32>
    %cst_5 = arith.constant 0.000000e+00 : f32
    %6 = vector.broadcast %cst_5 : f32 to vector<128x32xf32>
    %7 = arith.maximumf %5, %6 : vector<128x32xf32>
    %8 = arith.truncf %7 : vector<128x32xf32> to vector<128x32xbf16>
    %9 = vector.extract_strided_slice %8 {offsets = [0, 0], sizes = [6, 32], strides = [1, 1]} : vector<128x32xbf16> to vector<6x32xbf16>
    %10 = vector.extract_strided_slice %8 {offsets = [32, 0], sizes = [6, 32], strides = [1, 1]} : vector<128x32xbf16> to vector<6x32xbf16>
    %11 = vector.extract_strided_slice %8 {offsets = [2, 0], sizes = [6, 32], strides = [1, 1]} : vector<128x32xbf16> to vector<6x32xbf16>
    %12 = vector.extract_strided_slice %8 {offsets = [34, 0], sizes = [6, 32], strides = [1, 1]} : vector<128x32xbf16> to vector<6x32xbf16>
    %13 = vector.extract_strided_slice %8 {offsets = [64, 0], sizes = [6, 32], strides = [1, 1]} : vector<128x32xbf16> to vector<6x32xbf16>
    %14 = vector.extract_strided_slice %8 {offsets = [96, 0], sizes = [6, 32], strides = [1, 1]} : vector<128x32xbf16> to vector<6x32xbf16>
    %15 = vector.extract_strided_slice %8 {offsets = [66, 0], sizes = [6, 32], strides = [1, 1]} : vector<128x32xbf16> to vector<6x32xbf16>
    %16 = vector.extract_strided_slice %8 {offsets = [98, 0], sizes = [6, 32], strides = [1, 1]} : vector<128x32xbf16> to vector<6x32xbf16>
    %17 = vector.extract_strided_slice %8 {offsets = [8, 0], sizes = [6, 32], strides = [1, 1]} : vector<128x32xbf16> to vector<6x32xbf16>
    %18 = vector.extract_strided_slice %8 {offsets = [40, 0], sizes = [6, 32], strides = [1, 1]} : vector<128x32xbf16> to vector<6x32xbf16>
    %19 = vector.extract_strided_slice %8 {offsets = [10, 0], sizes = [6, 32], strides = [1, 1]} : vector<128x32xbf16> to vector<6x32xbf16>
    %20 = vector.extract_strided_slice %8 {offsets = [42, 0], sizes = [6, 32], strides = [1, 1]} : vector<128x32xbf16> to vector<6x32xbf16>
    %21 = vector.extract_strided_slice %8 {offsets = [72, 0], sizes = [6, 32], strides = [1, 1]} : vector<128x32xbf16> to vector<6x32xbf16>
    %22 = vector.extract_strided_slice %8 {offsets = [104, 0], sizes = [6, 32], strides = [1, 1]} : vector<128x32xbf16> to vector<6x32xbf16>
    %23 = vector.extract_strided_slice %8 {offsets = [74, 0], sizes = [6, 32], strides = [1, 1]} : vector<128x32xbf16> to vector<6x32xbf16>
    %24 = vector.extract_strided_slice %8 {offsets = [106, 0], sizes = [6, 32], strides = [1, 1]} : vector<128x32xbf16> to vector<6x32xbf16>
    %25 = tpu.concatenate %9, %10, %11, %12, %13, %14, %15, %16, %17, %18, %19, %20, %21, %22, %23, %24 in 1 : vector<6x32xbf16>, vector<6x32xbf16>, vector<6x32xbf16>, vector<6x32xbf16>, vector<6x32xbf16>, vector<6x32xbf16>, vector<6x32xbf16>, vector<6x32xbf16>, vector<6x32xbf16>, vector<6x32xbf16>, vector<6x32xbf16>, vector<6x32xbf16>, vector<6x32xbf16>, vector<6x32xbf16>, vector<6x32xbf16>, vector<6x32xbf16> -> vector<6x512xbf16>
    %26 = vector.extract_strided_slice %8 {offsets = [8, 0], sizes = [6, 32], strides = [1, 1]} : vector<128x32xbf16> to vector<6x32xbf16>
    %27 = vector.extract_strided_slice %8 {offsets = [40, 0], sizes = [6, 32], strides = [1, 1]} : vector<128x32xbf16> to vector<6x32xbf16>
    %28 = vector.extract_strided_slice %8 {offsets = [10, 0], sizes = [6, 32], strides = [1, 1]} : vector<128x32xbf16> to vector<6x32xbf16>
    %29 = vector.extract_strided_slice %8 {offsets = [42, 0], sizes = [6, 32], strides = [1, 1]} : vector<128x32xbf16> to vector<6x32xbf16>
    %30 = vector.extract_strided_slice %8 {offsets = [72, 0], sizes = [6, 32], strides = [1, 1]} : vector<128x32xbf16> to vector<6x32xbf16>
    %31 = vector.extract_strided_slice %8 {offsets = [104, 0], sizes = [6, 32], strides = [1, 1]} : vector<128x32xbf16> to vector<6x32xbf16>
    %32 = vector.extract_strided_slice %8 {offsets = [74, 0], sizes = [6, 32], strides = [1, 1]} : vector<128x32xbf16> to vector<6x32xbf16>
    %33 = vector.extract_strided_slice %8 {offsets = [106, 0], sizes = [6, 32], strides = [1, 1]} : vector<128x32xbf16> to vector<6x32xbf16>
    %34 = vector.extract_strided_slice %8 {offsets = [16, 0], sizes = [6, 32], strides = [1, 1]} : vector<128x32xbf16> to vector<6x32xbf16>
    %35 = vector.extract_strided_slice %8 {offsets = [48, 0], sizes = [6, 32], strides = [1, 1]} : vector<128x32xbf16> to vector<6x32xbf16>
    %36 = vector.extract_strided_slice %8 {offsets = [18, 0], sizes = [6, 32], strides = [1, 1]} : vector<128x32xbf16> to vector<6x32xbf16>
    %37 = vector.extract_strided_slice %8 {offsets = [50, 0], sizes = [6, 32], strides = [1, 1]} : vector<128x32xbf16> to vector<6x32xbf16>
    %38 = vector.extract_strided_slice %8 {offsets = [80, 0], sizes = [6, 32], strides = [1, 1]} : vector<128x32xbf16> to vector<6x32xbf16>
    %39 = vector.extract_strided_slice %8 {offsets = [112, 0], sizes = [6, 32], strides = [1, 1]} : vector<128x32xbf16> to vector<6x32xbf16>
    %40 = vector.extract_strided_slice %8 {offsets = [82, 0], sizes = [6, 32], strides = [1, 1]} : vector<128x32xbf16> to vector<6x32xbf16>
    %41 = vector.extract_strided_slice %8 {offsets = [114, 0], sizes = [6, 32], strides = [1, 1]} : vector<128x32xbf16> to vector<6x32xbf16>
    %42 = tpu.concatenate %26, %27, %28, %29, %30, %31, %32, %33, %34, %35, %36, %37, %38, %39, %40, %41 in 1 : vector<6x32xbf16>, vector<6x32xbf16>, vector<6x32xbf16>, vector<6x32xbf16>, vector<6x32xbf16>, vector<6x32xbf16>, vector<6x32xbf16>, vector<6x32xbf16>, vector<6x32xbf16>, vector<6x32xbf16>, vector<6x32xbf16>, vector<6x32xbf16>, vector<6x32xbf16>, vector<6x32xbf16>, vector<6x32xbf16>, vector<6x32xbf16> -> vector<6x512xbf16>
    %43 = vector.extract_strided_slice %8 {offsets = [16, 0], sizes = [6, 32], strides = [1, 1]} : vector<128x32xbf16> to vector<6x32xbf16>
    %44 = vector.extract_strided_slice %8 {offsets = [48, 0], sizes = [6, 32], strides = [1, 1]} : vector<128x32xbf16> to vector<6x32xbf16>
    %45 = vector.extract_strided_slice %8 {offsets = [18, 0], sizes = [6, 32], strides = [1, 1]} : vector<128x32xbf16> to vector<6x32xbf16>
    %46 = vector.extract_strided_slice %8 {offsets = [50, 0], sizes = [6, 32], strides = [1, 1]} : vector<128x32xbf16> to vector<6x32xbf16>
    %47 = vector.extract_strided_slice %8 {offsets = [80, 0], sizes = [6, 32], strides = [1, 1]} : vector<128x32xbf16> to vector<6x32xbf16>
    %48 = vector.extract_strided_slice %8 {offsets = [112, 0], sizes = [6, 32], strides = [1, 1]} : vector<128x32xbf16> to vector<6x32xbf16>
    %49 = vector.extract_strided_slice %8 {offsets = [82, 0], sizes = [6, 32], strides = [1, 1]} : vector<128x32xbf16> to vector<6x32xbf16>
    %50 = vector.extract_strided_slice %8 {offsets = [114, 0], sizes = [6, 32], strides = [1, 1]} : vector<128x32xbf16> to vector<6x32xbf16>
    %51 = vector.extract_strided_slice %8 {offsets = [24, 0], sizes = [6, 32], strides = [1, 1]} : vector<128x32xbf16> to vector<6x32xbf16>
    %52 = vector.extract_strided_slice %8 {offsets = [56, 0], sizes = [6, 32], strides = [1, 1]} : vector<128x32xbf16> to vector<6x32xbf16>
    %53 = vector.extract_strided_slice %8 {offsets = [26, 0], sizes = [6, 32], strides = [1, 1]} : vector<128x32xbf16> to vector<6x32xbf16>
    %54 = vector.extract_strided_slice %8 {offsets = [58, 0], sizes = [6, 32], strides = [1, 1]} : vector<128x32xbf16> to vector<6x32xbf16>
    %55 = vector.extract_strided_slice %8 {offsets = [88, 0], sizes = [6, 32], strides = [1, 1]} : vector<128x32xbf16> to vector<6x32xbf16>
    %56 = vector.extract_strided_slice %8 {offsets = [120, 0], sizes = [6, 32], strides = [1, 1]} : vector<128x32xbf16> to vector<6x32xbf16>
    %57 = vector.extract_strided_slice %8 {offsets = [90, 0], sizes = [6, 32], strides = [1, 1]} : vector<128x32xbf16> to vector<6x32xbf16>
    %58 = vector.extract_strided_slice %8 {offsets = [122, 0], sizes = [6, 32], strides = [1, 1]} : vector<128x32xbf16> to vector<6x32xbf16>
    %59 = tpu.concatenate %43, %44, %45, %46, %47, %48, %49, %50, %51, %52, %53, %54, %55, %56, %57, %58 in 1 : vector<6x32xbf16>, vector<6x32xbf16>, vector<6x32xbf16>, vector<6x32xbf16>, vector<6x32xbf16>, vector<6x32xbf16>, vector<6x32xbf16>, vector<6x32xbf16>, vector<6x32xbf16>, vector<6x32xbf16>, vector<6x32xbf16>, vector<6x32xbf16>, vector<6x32xbf16>, vector<6x32xbf16>, vector<6x32xbf16>, vector<6x32xbf16> -> vector<6x512xbf16>
    %60 = tpu.concatenate %25, %42, %59 in 0 : vector<6x512xbf16>, vector<6x512xbf16>, vector<6x512xbf16> -> vector<18x512xbf16>
    %c0_6 = arith.constant 0 : index
    %c0_7 = arith.constant 0 : index
    %61 = vector.load %arg4[%c0_6, %c0_7] : memref<512x64xbf16, #tpu.memory_space<vmem>>, vector<512x64xbf16>
    %cst_8 = arith.constant dense<0.000000e+00> : vector<18x64xf32>
    %62 = tpu.matmul %60, %61, %cst_8 {dimension_numbers = #tpu.dot_dimension_numbers<[1], [0], [0], [1], [0, 0, 1, 1], [], []>} : vector<18x512xbf16>, vector<512x64xbf16>, vector<18x64xf32> -> vector<18x64xf32>
    %c0_9 = arith.constant 0 : index
    %c0_10 = arith.constant 0 : index
    %63 = vector.load %arg5[%c0_9, %c0_10] : memref<1x64xf32, #tpu.memory_space<vmem>>, vector<1x64xf32>
    %64 = vector.broadcast %63 : vector<1x64xf32> to vector<18x64xf32>
    %65 = arith.addf %62, %64 : vector<18x64xf32>
    %cst_11 = arith.constant 0.000000e+00 : f32
    %66 = vector.broadcast %cst_11 : f32 to vector<18x64xf32>
    %67 = arith.maximumf %65, %66 : vector<18x64xf32>
    %68 = arith.truncf %67 : vector<18x64xf32> to vector<18x64xbf16>
    %69 = vector.extract_strided_slice %68 {offsets = [0, 0], sizes = [2, 64], strides = [1, 1]} : vector<18x64xbf16> to vector<2x64xbf16>
    %70 = vector.extract_strided_slice %68 {offsets = [2, 0], sizes = [2, 64], strides = [1, 1]} : vector<18x64xbf16> to vector<2x64xbf16>
    %71 = vector.extract_strided_slice %68 {offsets = [4, 0], sizes = [2, 64], strides = [1, 1]} : vector<18x64xbf16> to vector<2x64xbf16>
    %72 = vector.extract_strided_slice %68 {offsets = [6, 0], sizes = [2, 64], strides = [1, 1]} : vector<18x64xbf16> to vector<2x64xbf16>
    %73 = vector.extract_strided_slice %68 {offsets = [8, 0], sizes = [2, 64], strides = [1, 1]} : vector<18x64xbf16> to vector<2x64xbf16>
    %74 = vector.extract_strided_slice %68 {offsets = [10, 0], sizes = [2, 64], strides = [1, 1]} : vector<18x64xbf16> to vector<2x64xbf16>
    %75 = vector.extract_strided_slice %68 {offsets = [12, 0], sizes = [2, 64], strides = [1, 1]} : vector<18x64xbf16> to vector<2x64xbf16>
    %76 = vector.extract_strided_slice %68 {offsets = [14, 0], sizes = [2, 64], strides = [1, 1]} : vector<18x64xbf16> to vector<2x64xbf16>
    %77 = vector.extract_strided_slice %68 {offsets = [16, 0], sizes = [2, 64], strides = [1, 1]} : vector<18x64xbf16> to vector<2x64xbf16>
    %78 = tpu.concatenate %69, %70, %71, %72, %73, %74, %75, %76, %77 in 1 : vector<2x64xbf16>, vector<2x64xbf16>, vector<2x64xbf16>, vector<2x64xbf16>, vector<2x64xbf16>, vector<2x64xbf16>, vector<2x64xbf16>, vector<2x64xbf16>, vector<2x64xbf16> -> vector<2x576xbf16>
    %c0_12 = arith.constant 0 : index
    %c0_13 = arith.constant 0 : index
    %79 = vector.load %arg6[%c0_12, %c0_13] : memref<576x64xbf16, #tpu.memory_space<vmem>>, vector<576x64xbf16>
    %cst_14 = arith.constant dense<0.000000e+00> : vector<2x64xf32>
    %80 = tpu.matmul %78, %79, %cst_14 {dimension_numbers = #tpu.dot_dimension_numbers<[1], [0], [0], [1], [0, 0, 1, 1], [], []>} : vector<2x576xbf16>, vector<576x64xbf16>, vector<2x64xf32> -> vector<2x64xf32>
    %c0_15 = arith.constant 0 : index
    %c0_16 = arith.constant 0 : index
    %81 = vector.load %arg7[%c0_15, %c0_16] : memref<1x64xf32, #tpu.memory_space<vmem>>, vector<1x64xf32>
    %82 = vector.broadcast %81 : vector<1x64xf32> to vector<2x64xf32>
    %83 = arith.addf %80, %82 : vector<2x64xf32>
    %cst_17 = arith.constant 0.000000e+00 : f32
    %84 = vector.broadcast %cst_17 : f32 to vector<2x64xf32>
    %85 = arith.maximumf %83, %84 : vector<2x64xf32>
    %86 = arith.truncf %85 : vector<2x64xf32> to vector<2x64xbf16>
    %c0_18 = arith.constant 0 : index
    %c0_19 = arith.constant 0 : index
    %87 = vector.load %arg8[%c0_18, %c0_19] : memref<64x512xbf16, #tpu.memory_space<vmem>>, vector<64x512xbf16>
    %cst_20 = arith.constant dense<0.000000e+00> : vector<2x512xf32>
    %88 = tpu.matmul %86, %87, %cst_20 {dimension_numbers = #tpu.dot_dimension_numbers<[1], [0], [0], [1], [0, 0, 1, 1], [], []>} : vector<2x64xbf16>, vector<64x512xbf16>, vector<2x512xf32> -> vector<2x512xf32>
    %c0_21 = arith.constant 0 : index
    %c0_22 = arith.constant 0 : index
    %89 = vector.load %arg9[%c0_21, %c0_22] : memref<1x512xf32, #tpu.memory_space<vmem>>, vector<1x512xf32>
    %90 = vector.broadcast %89 : vector<1x512xf32> to vector<2x512xf32>
    %91 = arith.addf %88, %90 : vector<2x512xf32>
    %cst_23 = arith.constant 0.000000e+00 : f32
    %92 = vector.broadcast %cst_23 : f32 to vector<2x512xf32>
    %93 = arith.maximumf %91, %92 : vector<2x512xf32>
    %94 = arith.truncf %93 : vector<2x512xf32> to vector<2x512xbf16>
    %c0_24 = arith.constant 0 : index
    %c0_25 = arith.constant 0 : index
    %95 = vector.load %arg10[%c0_24, %c0_25] : memref<512x128xbf16, #tpu.memory_space<vmem>>, vector<512x128xbf16>
    %cst_26 = arith.constant dense<0.000000e+00> : vector<2x128xf32>
    %96 = tpu.matmul %94, %95, %cst_26 {dimension_numbers = #tpu.dot_dimension_numbers<[1], [0], [0], [1], [0, 0, 1, 1], [], []>} : vector<2x512xbf16>, vector<512x128xbf16>, vector<2x128xf32> -> vector<2x128xf32>
    %c0_27 = arith.constant 0 : index
    %c0_28 = arith.constant 0 : index
    %97 = vector.load %arg11[%c0_27, %c0_28] : memref<1x128xf32, #tpu.memory_space<vmem>>, vector<1x128xf32>
    %98 = vector.broadcast %97 : vector<1x128xf32> to vector<2x128xf32>
    %99 = arith.addf %96, %98 : vector<2x128xf32>
    %c0_29 = arith.constant 0 : index
    %c0_30 = arith.constant 0 : index
    %100 = vector.load %arg12[%c0_29, %c0_30] : memref<2x128xf32, #tpu.memory_space<vmem>>, vector<2x128xf32>
    tpu.vector_store %arg12[%c0_29, %c0_30], %99 {strides = array<i32>} : memref<2x128xf32, #tpu.memory_space<vmem>>, vector<2x128xf32>,
    return
  }
  func.func @transform_0(%arg0: i32) -> (i32, i32) {
    %c0_i32 = arith.constant 0 : i32
    %c0_i32_0 = arith.constant 0 : i32
    return %arg0, %c0_i32 : i32, i32
  }
  func.func @transform_1(%arg0: i32) -> (i32, i32) {
    %c0_i32 = arith.constant 0 : i32
    %c0_i32_0 = arith.constant 0 : i32
    %c0_i32_1 = arith.constant 0 : i32
    return %c0_i32, %c0_i32_0 : i32, i32
  }
  func.func @transform_2(%arg0: i32) -> (i32, i32) {
    %c0_i32 = arith.constant 0 : i32
    %c0_i32_0 = arith.constant 0 : i32
    %c0_i32_1 = arith.constant 0 : i32
    return %c0_i32, %c0_i32_0 : i32, i32
  }
  func.func @transform_3(%arg0: i32) -> (i32, i32) {
    %c0_i32 = arith.constant 0 : i32
    %c0_i32_0 = arith.constant 0 : i32
    %c0_i32_1 = arith.constant 0 : i32
    return %c0_i32, %c0_i32_0 : i32, i32
  }
  func.func @transform_4(%arg0: i32) -> (i32, i32) {
    %c0_i32 = arith.constant 0 : i32
    %c0_i32_0 = arith.constant 0 : i32
    %c0_i32_1 = arith.constant 0 : i32
    return %c0_i32, %c0_i32_0 : i32, i32
  }
  func.func @transform_5(%arg0: i32) -> (i32, i32) {
    %c0_i32 = arith.constant 0 : i32
    %c0_i32_0 = arith.constant 0 : i32
    %c0_i32_1 = arith.constant 0 : i32
    return %c0_i32, %c0_i32_0 : i32, i32
  }
  func.func @transform_6(%arg0: i32) -> (i32, i32) {
    %c0_i32 = arith.constant 0 : i32
    %c0_i32_0 = arith.constant 0 : i32
    %c0_i32_1 = arith.constant 0 : i32
    return %c0_i32, %c0_i32_0 : i32, i32
  }
  func.func @transform_7(%arg0: i32) -> (i32, i32) {
    %c0_i32 = arith.constant 0 : i32
    %c0_i32_0 = arith.constant 0 : i32
    %c0_i32_1 = arith.constant 0 : i32
    return %c0_i32, %c0_i32_0 : i32, i32
  }
  func.func @transform_8(%arg0: i32) -> (i32, i32) {
    %c0_i32 = arith.constant 0 : i32
    %c0_i32_0 = arith.constant 0 : i32
    %c0_i32_1 = arith.constant 0 : i32
    return %c0_i32, %c0_i32_0 : i32, i32
  }
  func.func @transform_9(%arg0: i32) -> (i32, i32) {
    %c0_i32 = arith.constant 0 : i32
    %c0_i32_0 = arith.constant 0 : i32
    %c0_i32_1 = arith.constant 0 : i32
    return %c0_i32, %c0_i32_0 : i32, i32
  }
  func.func @transform_10(%arg0: i32) -> (i32, i32) {
    %c0_i32 = arith.constant 0 : i32
    %c0_i32_0 = arith.constant 0 : i32
    %c0_i32_1 = arith.constant 0 : i32
    return %c0_i32, %c0_i32_0 : i32, i32
  }
  func.func @transform_11(%arg0: i32) -> (i32, i32) {
    %c0_i32 = arith.constant 0 : i32
    %c0_i32_0 = arith.constant 0 : i32
    return %arg0, %c0_i32 : i32, i32
  }
}

</mosaic_0001>

<llo_original>
// kernel: dqn_forward.1
$region0: #{dqn_forward.1}
  #allocation0 [shape = 'u32[]', space=smem, size = 0x4, offset = 0x4, fixed_abs, tag = 'smem constant byte address 0x4 - core index']
  #allocation1 [shape = 'u32[144,128]{1,0:T(1,128)}', space=vmem, size = 0x12000, scoped, tag = 'internal scratch']
  %s0 = inlined_call_operand.vmem [shape: bf16[128,256], index: 0, kind: input, shape index: {}]
  %s1 = inlined_call_operand.vmem [shape: bf16[256,32], index: 1, kind: input, shape index: {}]
  %s2 = inlined_call_operand.vmem [shape: f32[1,32], index: 2, kind: input, shape index: {}]
  %s3 = inlined_call_operand.vmem [shape: bf16[512,64], index: 3, kind: input, shape index: {}]
  %s4 = inlined_call_operand.vmem [shape: f32[1,64], index: 4, kind: input, shape index: {}]
  %s5 = inlined_call_operand.vmem [shape: bf16[576,64], index: 5, kind: input, shape index: {}]
  %s6 = inlined_call_operand.vmem [shape: f32[1,64], index: 6, kind: input, shape index: {}]
  %s7 = inlined_call_operand.vmem [shape: bf16[64,512], index: 7, kind: input, shape index: {}]
  %s8 = inlined_call_operand.vmem [shape: f32[1,512], index: 8, kind: input, shape index: {}]
  %s9 = inlined_call_operand.vmem [shape: bf16[512,128], index: 9, kind: input, shape index: {}]
  %s10 = inlined_call_operand.vmem [shape: f32[1,128], index: 10, kind: input, shape index: {}]
  %s11 = inlined_call_operand.hbm [shape: f32[2,128], index: 11, kind: output, shape index: {}]
  %s12 = sld [smem:[#allocation0]]
  $region54: #{dqn_forward.1} parent=0
    _
  %s14 = ssub.s32 1, %s12
  %s15 = scalar_select 0, %s14, %s12
  $region1: #{dqn_forward.1} parent=0
    #allocation2 [shape = 'u8[1024]{0}', space=vmem, size = 0x400, scoped, tag = 'output window, operand 0, single buffered']
    #allocation3 [shape = 's32[1]{0}', space=sflag, size = 0x4, scoped, tag = 'scoped memory for dqn_forward.1']
    %16 = vsyncpa [#allocation3], 0
    // Predicated region
    $region2: #{dqn_forward.1} parent=1 // pred_check
      _
    $region3: #{dqn_forward.1} parent=1 // pred_check_branch
      %18 = sbr.rel (0) target = $region5
    $region4: #{dqn_forward.1} parent=1 // pred_region
      _
    $region5: #{dqn_forward.1} parent=1 // pred_fallthru
      _
    // Predicated region
    $region6: #{dqn_forward.1} parent=1 // pred_check
      _
    $region7: #{dqn_forward.1} parent=1 // pred_check_branch
      %20 = sbr.rel (0) target = $region9
    $region8: #{dqn_forward.1} parent=1 // pred_region
      _
    $region9: #{dqn_forward.1} parent=1 // pred_fallthru
      _
    // Predicated region
    $region10: #{dqn_forward.1} parent=1 // pred_check
      _
    $region11: #{dqn_forward.1} parent=1 // pred_check_branch
      %22 = sbr.rel (0) target = $region13
    $region12: #{dqn_forward.1} parent=1 // pred_region
      _
    $region13: #{dqn_forward.1} parent=1 // pred_fallthru
      _
    // Predicated region
    $region14: #{dqn_forward.1} parent=1 // pred_check
      _
    $region15: #{dqn_forward.1} parent=1 // pred_check_branch
      %24 = sbr.rel (0) target = $region17
    $region16: #{dqn_forward.1} parent=1 // pred_region
      _
    $region17: #{dqn_forward.1} parent=1 // pred_fallthru
      _
    // Predicated region
    $region18: #{dqn_forward.1} parent=1 // pred_check
      _
    $region19: #{dqn_forward.1} parent=1 // pred_check_branch
      %26 = sbr.rel (0) target = $region21
    $region20: #{dqn_forward.1} parent=1 // pred_region
      _
    $region21: #{dqn_forward.1} parent=1 // pred_fallthru
      _
    // Predicated region
    $region22: #{dqn_forward.1} parent=1 // pred_check
      _
    $region23: #{dqn_forward.1} parent=1 // pred_check_branch
      %28 = sbr.rel (0) target = $region25
    $region24: #{dqn_forward.1} parent=1 // pred_region
      _
    $region25: #{dqn_forward.1} parent=1 // pred_fallthru
      _
    // Predicated region
    $region26: #{dqn_forward.1} parent=1 // pred_check
      _
    $region27: #{dqn_forward.1} parent=1 // pred_check_branch
      %30 = sbr.rel (0) target = $region29
    $region28: #{dqn_forward.1} parent=1 // pred_region
      _
    $region29: #{dqn_forward.1} parent=1 // pred_fallthru
      _
    // Predicated region
    $region30: #{dqn_forward.1} parent=1 // pred_check
      _
    $region31: #{dqn_forward.1} parent=1 // pred_check_branch
      %32 = sbr.rel (0) target = $region33
    $region32: #{dqn_forward.1} parent=1 // pred_region
      _
    $region33: #{dqn_forward.1} parent=1 // pred_fallthru
      _
    // Predicated region
    $region34: #{dqn_forward.1} parent=1 // pred_check
      _
    $region35: #{dqn_forward.1} parent=1 // pred_check_branch
      %34 = sbr.rel (0) target = $region37
    $region36: #{dqn_forward.1} parent=1 // pred_region
      _
    $region37: #{dqn_forward.1} parent=1 // pred_fallthru
      _
    // Predicated region
    $region38: #{dqn_forward.1} parent=1 // pred_check
      _
    $region39: #{dqn_forward.1} parent=1 // pred_check_branch
      %36 = sbr.rel (0) target = $region41
    $region40: #{dqn_forward.1} parent=1 // pred_region
      _
    $region41: #{dqn_forward.1} parent=1 // pred_fallthru
      _
    // Predicated region
    $region42: #{dqn_forward.1} parent=1 // pred_check
      _
    $region43: #{dqn_forward.1} parent=1 // pred_check_branch
      %38 = sbr.rel (0) target = $region45
    $region44: #{dqn_forward.1} parent=1 // pred_region
      _
    $region45: #{dqn_forward.1} parent=1 // pred_fallthru
      _
    %v40 = vld [vmem:[%s0] sm:$0xff]
    %v41 = vld [vmem:[%s0 + $0x8] sm:$0xff]
    %v42 = vld [vmem:[%s0 + $0x10] sm:$0xff]
    %v43 = vld [vmem:[%s0 + $0x18] sm:$0xff]
    %v44 = vld [vmem:[%s0 + $0x20] sm:$0xff]
    %v45 = vld [vmem:[%s0 + $0x28] sm:$0xff]
    %v46 = vld [vmem:[%s0 + $0x30] sm:$0xff]
    %v47 = vld [vmem:[%s0 + $0x38] sm:$0xff]
    %v48 = vld [vmem:[%s0 + $0x40] sm:$0xff]
    %v49 = vld [vmem:[%s0 + $0x48] sm:$0xff]
    %v50 = vld [vmem:[%s0 + $0x50] sm:$0xff]
    %v51 = vld [vmem:[%s0 + $0x58] sm:$0xff]
    %v52 = vld [vmem:[%s0 + $0x60] sm:$0xff]
    %v53 = vld [vmem:[%s0 + $0x68] sm:$0xff]
    %v54 = vld [vmem:[%s0 + $0x70] sm:$0xff]
    %v55 = vld [vmem:[%s0 + $0x78] sm:$0xff]
    %v56 = vld [vmem:[%s1] sm:$0xf]
    %v57 = vld [vmem:[%s1 + $0x4] sm:$0xf]
    %v58 = vld [vmem:[%s1 + $0x8] sm:$0xf]
    %v59 = vld [vmem:[%s1 + $0xc] sm:$0xf]
    %v60 = vld [vmem:[%s1 + $0x10] sm:$0xf]
    %v61 = vld [vmem:[%s1 + $0x14] sm:$0xf]
    %v62 = vld [vmem:[%s1 + $0x18] sm:$0xf]
    %v63 = vld [vmem:[%s1 + $0x1c] sm:$0xf]
    %v64 = vld [vmem:[%s1 + $0x20] sm:$0xf]
    %v65 = vld [vmem:[%s1 + $0x24] sm:$0xf]
    %v66 = vld [vmem:[%s1 + $0x28] sm:$0xf]
    %v67 = vld [vmem:[%s1 + $0x2c] sm:$0xf]
    %v68 = vld [vmem:[%s1 + $0x30] sm:$0xf]
    %v69 = vld [vmem:[%s1 + $0x34] sm:$0xf]
    %v70 = vld [vmem:[%s1 + $0x38] sm:$0xf]
    %v71 = vld [vmem:[%s1 + $0x3c] sm:$0xf]
    %v72 = vld [vmem:[%s1 + $0x40] sm:$0xf]
    %v73 = vld [vmem:[%s1 + $0x44] sm:$0xf]
    %v74 = vld [vmem:[%s1 + $0x48] sm:$0xf]
    %v75 = vld [vmem:[%s1 + $0x4c] sm:$0xf]
    %v76 = vld [vmem:[%s1 + $0x50] sm:$0xf]
    %v77 = vld [vmem:[%s1 + $0x54] sm:$0xf]
    %v78 = vld [vmem:[%s1 + $0x58] sm:$0xf]
    %v79 = vld [vmem:[%s1 + $0x5c] sm:$0xf]
    %v80 = vld [vmem:[%s1 + $0x60] sm:$0xf]
    %v81 = vld [vmem:[%s1 + $0x64] sm:$0xf]
    %v82 = vld [vmem:[%s1 + $0x68] sm:$0xf]
    %v83 = vld [vmem:[%s1 + $0x6c] sm:$0xf]
    %v84 = vld [vmem:[%s1 + $0x70] sm:$0xf]
    %v85 = vld [vmem:[%s1 + $0x74] sm:$0xf]
    %v86 = vld [vmem:[%s1 + $0x78] sm:$0xf]
    %v87 = vld [vmem:[%s1 + $0x7c] sm:$0xf]
    %v88 = vld [vmem:[%s2] sm:$0x1]
    %v90 = vlaneseq
    %v91 = vshrl.u32 %v90, 7
    %v92 = vsub.s32 0, %v91
    %v93 = vrot.slane %v88, %v92
    %v111 = vunpack.c.l.b16 %v40
    %v112 = vunpack.c.h.b16 %v40
    %v113 = vunpack.c.l.b16 %v41
    %v114 = vunpack.c.h.b16 %v41
    %v115 = vunpack.c.l.b16 %v42
    %v116 = vunpack.c.h.b16 %v42
    %v117 = vunpack.c.l.b16 %v43
    %v118 = vunpack.c.h.b16 %v43
    %v119 = vunpack.c.l.b16 %v44
    %v120 = vunpack.c.h.b16 %v44
    %v121 = vunpack.c.l.b16 %v45
    %v122 = vunpack.c.h.b16 %v45
    %v123 = vunpack.c.l.b16 %v46
    %v124 = vunpack.c.h.b16 %v46
    %v125 = vunpack.c.l.b16 %v47
    %v126 = vunpack.c.h.b16 %v47
    %v127 = vunpack.c.l.b16 %v48
    %v128 = vunpack.c.h.b16 %v48
    %v129 = vunpack.c.l.b16 %v49
    %v130 = vunpack.c.h.b16 %v49
    %v131 = vunpack.c.l.b16 %v50
    %v132 = vunpack.c.h.b16 %v50
    %v133 = vunpack.c.l.b16 %v51
    %v134 = vunpack.c.h.b16 %v51
    %v135 = vunpack.c.l.b16 %v52
    %v136 = vunpack.c.h.b16 %v52
    %v137 = vunpack.c.l.b16 %v53
    %v138 = vunpack.c.h.b16 %v53
    %v139 = vunpack.c.l.b16 %v54
    %v140 = vunpack.c.h.b16 %v54
    %v141 = vunpack.c.l.b16 %v55
    %v142 = vunpack.c.h.b16 %v55
    %v143 = vpack.c.b16 %v113, %v111
    %v144 = vpack.c.b16 %v114, %v112
    %v145 = vpack.c.b16 %v117, %v115
    %v146 = vpack.c.b16 %v118, %v116
    %v147 = vpack.c.b16 %v121, %v119
    %v148 = vpack.c.b16 %v122, %v120
    %v149 = vpack.c.b16 %v125, %v123
    %v150 = vpack.c.b16 %v126, %v124
    %v151 = vpack.c.b16 %v129, %v127
    %v152 = vpack.c.b16 %v130, %v128
    %v153 = vpack.c.b16 %v133, %v131
    %v154 = vpack.c.b16 %v134, %v132
    %v155 = vpack.c.b16 %v137, %v135
    %v156 = vpack.c.b16 %v138, %v136
    %v157 = vpack.c.b16 %v141, %v139
    %v158 = vpack.c.b16 %v142, %v140
    %v207 = vunpack.c.l.b16 %v56
    %v208 = vunpack.c.l.b16 %v57
    %v209 = vunpack.c.l.b16 %v58
    %v210 = vunpack.c.l.b16 %v59
    %v211 = vunpack.c.l.b16 %v60
    %v212 = vunpack.c.l.b16 %v61
    %v213 = vunpack.c.l.b16 %v62
    %v214 = vunpack.c.l.b16 %v63
    %v215 = vunpack.c.l.b16 %v64
    %v216 = vunpack.c.l.b16 %v65
    %v217 = vunpack.c.l.b16 %v66
    %v218 = vunpack.c.l.b16 %v67
    %v219 = vunpack.c.l.b16 %v68
    %v220 = vunpack.c.l.b16 %v69
    %v221 = vunpack.c.l.b16 %v70
    %v222 = vunpack.c.l.b16 %v71
    %v223 = vunpack.c.l.b16 %v72
    %v224 = vunpack.c.l.b16 %v73
    %v225 = vunpack.c.l.b16 %v74
    %v226 = vunpack.c.l.b16 %v75
    %v227 = vunpack.c.l.b16 %v76
    %v228 = vunpack.c.l.b16 %v77
    %v229 = vunpack.c.l.b16 %v78
    %v230 = vunpack.c.l.b16 %v79
    %v231 = vunpack.c.l.b16 %v80
    %v232 = vunpack.c.l.b16 %v81
    %v233 = vunpack.c.l.b16 %v82
    %v234 = vunpack.c.l.b16 %v83
    %v235 = vunpack.c.l.b16 %v84
    %v236 = vunpack.c.l.b16 %v85
    %v237 = vunpack.c.l.b16 %v86
    %v238 = vunpack.c.l.b16 %v87
    %v239 = vpack.c.b16 %v208, %v207
    %v240 = vpack.c.b16 %v210, %v209
    %v241 = vpack.c.b16 %v212, %v211
    %v242 = vpack.c.b16 %v214, %v213
    %v243 = vpack.c.b16 %v216, %v215
    %v244 = vpack.c.b16 %v218, %v217
    %v245 = vpack.c.b16 %v220, %v219
    %v246 = vpack.c.b16 %v222, %v221
    %v247 = vpack.c.b16 %v224, %v223
    %v248 = vpack.c.b16 %v226, %v225
    %v249 = vpack.c.b16 %v228, %v227
    %v250 = vpack.c.b16 %v230, %v229
    %v251 = vpack.c.b16 %v232, %v231
    %v252 = vpack.c.b16 %v234, %v233
    %v253 = vpack.c.b16 %v236, %v235
    %v254 = vpack.c.b16 %v238, %v237
    %271 = vmatprep.subr.bf16.mxu0 0
    %272 = vmatpush1.bf16.msra.mxu0 %v239
    %273 = vmatprep.subr.bf16.mxu0 0
    %274 = vmatpush1.bf16.msra.mxu0 %v240
    %275 = vmatprep.subr.bf16.mxu0 0
    %276 = vmatpush1.bf16.msra.mxu0 %v241
    %277 = vmatprep.subr.bf16.mxu0 0
    %278 = vmatpush1.bf16.msra.mxu0 %v242
    %279 = vmatprep.subr.bf16.mxu0 0
    %280 = vmatpush1.bf16.msra.mxu0 %v243
    %281 = vmatprep.subr.bf16.mxu0 0
    %282 = vmatpush1.bf16.msra.mxu0 %v244
    %283 = vmatprep.subr.bf16.mxu0 0
    %284 = vmatpush1.bf16.msra.mxu0 %v245
    %285 = vmatprep.subr.bf16.mxu0 0
    %286 = vmatpush1.bf16.msra.mxu0 %v246
    %287 = vmatprep.subr.bf16.mxu0 0
    %288 = vmatpush1.bf16.msra.mxu0 %v247
    %289 = vmatprep.subr.bf16.mxu0 0
    %290 = vmatpush1.bf16.msra.mxu0 %v248
    %291 = vmatprep.subr.bf16.mxu0 0
    %292 = vmatpush1.bf16.msra.mxu0 %v249
    %293 = vmatprep.subr.bf16.mxu0 0
    %294 = vmatpush1.bf16.msra.mxu0 %v250
    %295 = vmatprep.subr.bf16.mxu0 0
    %296 = vmatpush1.bf16.msra.mxu0 %v251
    %297 = vmatprep.subr.bf16.mxu0 0
    %298 = vmatpush1.bf16.msra.mxu0 %v252
    %299 = vmatprep.subr.bf16.mxu0 0
    %300 = vmatpush1.bf16.msra.mxu0 %v253
    %301 = vmatprep.subr.bf16.mxu0 0
    %302 = vmatpush1.bf16.msra.mxu0 %v254
    %303 = vmatprep.mubr.bf16.mxu0 %v144
    %304 = vmatmul.mubr.bf16.gmra.mrb[0].mxu0 %v143
    %v305 = vpop.f32.mrb[0].mxu0
    %v306 = vadd.f32 %v93, %v305
    %v307 = vpop.f32.mrb[0].mxu0
    %v308 = vpop.f32.mrb[0].mxu0
    %v309 = vadd.f32 %v93, %v308
    %v310 = vpop.f32.mrb[0].mxu0
    %311 = vmatprep.mubr.bf16.mxu0 %v146
    %312 = vmatmul.mubr.bf16.gmra.mrb[0].mxu0 %v145
    %v313 = vpop.f32.mrb[0].mxu0
    %v314 = vadd.f32 %v93, %v313
    %v315 = vpop.f32.mrb[0].mxu0
    %v316 = vpop.f32.mrb[0].mxu0
    %v317 = vadd.f32 %v93, %v316
    %v318 = vpop.f32.mrb[0].mxu0
    %319 = vmatprep.mubr.bf16.mxu0 %v148
    %320 = vmatmul.mubr.bf16.gmra.mrb[0].mxu0 %v147
    %v321 = vpop.f32.mrb[0].mxu0
    %v322 = vadd.f32 %v93, %v321
    %v323 = vpop.f32.mrb[0].mxu0
    %v324 = vpop.f32.mrb[0].mxu0
    %v325 = vadd.f32 %v93, %v324
    %v326 = vpop.f32.mrb[0].mxu0
    %327 = vmatprep.mubr.bf16.mxu0 %v150
    %328 = vmatmul.mubr.bf16.gmra.mrb[0].mxu0 %v149
    %v329 = vpop.f32.mrb[0].mxu0
    %v330 = vadd.f32 %v93, %v329
    %v331 = vpop.f32.mrb[0].mxu0
    %v332 = vpop.f32.mrb[0].mxu0
    %v333 = vadd.f32 %v93, %v332
    %v334 = vpop.f32.mrb[0].mxu0
    %335 = vmatprep.mubr.bf16.mxu0 %v152
    %336 = vmatmul.mubr.bf16.gmra.mrb[0].mxu0 %v151
    %v337 = vpop.f32.mrb[0].mxu0
    %v338 = vadd.f32 %v93, %v337
    %v339 = vpop.f32.mrb[0].mxu0
    %v340 = vpop.f32.mrb[0].mxu0
    %v341 = vadd.f32 %v93, %v340
    %v342 = vpop.f32.mrb[0].mxu0
    %343 = vmatprep.mubr.bf16.mxu0 %v154
    %344 = vmatmul.mubr.bf16.gmra.mrb[0].mxu0 %v153
    %v345 = vpop.f32.mrb[0].mxu0
    %v346 = vadd.f32 %v93, %v345
    %v347 = vpop.f32.mrb[0].mxu0
    %v348 = vpop.f32.mrb[0].mxu0
    %v349 = vadd.f32 %v93, %v348
    %v350 = vpop.f32.mrb[0].mxu0
    %351 = vmatprep.mubr.bf16.mxu0 %v156
    %352 = vmatmul.mubr.bf16.gmra.mrb[0].mxu0 %v155
    %v353 = vpop.f32.mrb[0].mxu0
    %v354 = vadd.f32 %v93, %v353
    %v355 = vpop.f32.mrb[0].mxu0
    %v356 = vpop.f32.mrb[0].mxu0
    %v357 = vadd.f32 %v93, %v356
    %v358 = vpop.f32.mrb[0].mxu0
    %359 = vmatprep.mubr.bf16.mxu0 %v158
    %360 = vmatmul.mubr.bf16.gmra.mrb[0].mxu0 %v157
    %v361 = vpop.f32.mrb[0].mxu0
    %v362 = vadd.f32 %v93, %v361
    %v363 = vpop.f32.mrb[0].mxu0
    %v364 = vpop.f32.mrb[0].mxu0
    %v365 = vadd.f32 %v93, %v364
    %v366 = vpop.f32.mrb[0].mxu0
    %367 = vdwg.mxu0
    %v368 = vmax.f32 %v306, 0.0
    %v369 = vmax.f32 %v309, 0.0
    %v370 = vmax.f32 %v314, 0.0
    %v371 = vmax.f32 %v317, 0.0
    %v372 = vmax.f32 %v322, 0.0
    %v373 = vmax.f32 %v325, 0.0
    %v374 = vmax.f32 %v330, 0.0
    %v375 = vmax.f32 %v333, 0.0
    %v376 = vmax.f32 %v338, 0.0
    %v377 = vmax.f32 %v341, 0.0
    %v378 = vmax.f32 %v346, 0.0
    %v379 = vmax.f32 %v349, 0.0
    %v380 = vmax.f32 %v354, 0.0
    %v381 = vmax.f32 %v357, 0.0
    %v382 = vmax.f32 %v362, 0.0
    %v383 = vmax.f32 %v365, 0.0
    %v384 = vpack.c.bf16 %v369, %v368
    %v385 = vpack.c.bf16 %v371, %v370
    %v386 = vpack.c.bf16 %v373, %v372
    %v387 = vpack.c.bf16 %v375, %v374
    %v388 = vpack.c.bf16 %v377, %v376
    %v389 = vpack.c.bf16 %v379, %v378
    %v390 = vpack.c.bf16 %v381, %v380
    %v391 = vpack.c.bf16 %v383, %v382
    %393 = vrot.lane.b32.xlu0 %v386, 32
    %v394 = vpop.permute.xlu0 %393
    %v396 = vrot.slane %v384, 1
    %397 = vrot.lane.b32.xlu0 %v396, 64
    %v398 = vpop.permute.xlu0 %397
    %v399 = vrot.slane %v386, 1
    %400 = vrot.lane.b32.xlu0 %v399, 96
    %v401 = vpop.permute.xlu0 %400
    %403 = vrot.lane.b32.xlu0 %v390, 32
    %v404 = vpop.permute.xlu0 %403
    %v406 = vrot.slane %v388, 1
    %407 = vrot.lane.b32.xlu0 %v406, 64
    %v408 = vpop.permute.xlu0 %407
    %v409 = vrot.slane %v390, 1
    %410 = vrot.lane.b32.xlu0 %v409, 96
    %v411 = vpop.permute.xlu0 %410
    %v412 = vrot.slane %v384, 4
    %v413 = vrot.slane %v386, 4
    %414 = vrot.lane.b32.xlu0 %v413, 32
    %v415 = vpop.permute.xlu0 %414
    %v416 = vrot.slane %v384, 5
    %417 = vrot.lane.b32.xlu0 %v416, 64
    %v418 = vpop.permute.xlu0 %417
    %v419 = vrot.slane %v386, 5
    %420 = vrot.lane.b32.xlu0 %v419, 96
    %v421 = vpop.permute.xlu0 %420
    %v422 = vrot.slane %v388, 4
    %v423 = vrot.slane %v390, 4
    %424 = vrot.lane.b32.xlu0 %v423, 32
    %v425 = vpop.permute.xlu0 %424
    %v426 = vrot.slane %v388, 5
    %427 = vrot.lane.b32.xlu0 %v426, 64
    %v428 = vpop.permute.xlu0 %427
    %v429 = vrot.slane %v390, 5
    %430 = vrot.lane.b32.xlu0 %v429, 96
    %v431 = vpop.permute.xlu0 %430
    %vm432 = vcmask 261120
    %v435 = vsel %vm432, %v384, %v394
    %vm436 = vcmask 523264
    %v438 = vsel %vm436, %v435, %v398
    %vm439 = vcmask 785408
    %v441 = vsel %vm439, %v438, %v401
    %v444 = vsel %vm432, %v388, %v404
    %v446 = vsel %vm436, %v444, %v408
    %v448 = vsel %vm439, %v446, %v411
    %v451 = vsel %vm432, %v412, %v415
    %v453 = vsel %vm436, %v451, %v418
    %v455 = vsel %vm439, %v453, %v421
    %v458 = vsel %vm432, %v422, %v425
    %v460 = vsel %vm436, %v458, %v428
    %v462 = vsel %vm439, %v460, %v431
    %v464 = vrot.slane %v385, 4
    %v466 = vrot.slane %v387, 4
    %467 = vrot.lane.b32.xlu0 %v466, 32
    %v468 = vpop.permute.xlu0 %467
    %v469 = vrot.slane %v385, 5
    %470 = vrot.lane.b32.xlu0 %v469, 64
    %v471 = vpop.permute.xlu0 %470
    %v472 = vrot.slane %v387, 5
    %473 = vrot.lane.b32.xlu0 %v472, 96
    %v474 = vpop.permute.xlu0 %473
    %v476 = vrot.slane %v389, 4
    %v478 = vrot.slane %v391, 4
    %479 = vrot.lane.b32.xlu0 %v478, 32
    %v480 = vpop.permute.xlu0 %479
    %v481 = vrot.slane %v389, 5
    %482 = vrot.lane.b32.xlu0 %v481, 64
    %v483 = vpop.permute.xlu0 %482
    %v484 = vrot.slane %v391, 5
    %485 = vrot.lane.b32.xlu0 %v484, 96
    %v486 = vpop.permute.xlu0 %485
    %v489 = vsel %vm432, %v464, %v468
    %v491 = vsel %vm436, %v489, %v471
    %v493 = vsel %vm439, %v491, %v474
    %v496 = vsel %vm432, %v476, %v480
    %v498 = vsel %vm436, %v496, %v483
    %v500 = vsel %vm439, %v498, %v486
    %501 = vrot.lane.b32.xlu0 %v387, 32
    %v502 = vpop.permute.xlu0 %501
    %v503 = vrot.slane %v385, 1
    %504 = vrot.lane.b32.xlu0 %v503, 64
    %v505 = vpop.permute.xlu0 %504
    %v506 = vrot.slane %v387, 1
    %507 = vrot.lane.b32.xlu0 %v506, 96
    %v508 = vpop.permute.xlu0 %507
    %509 = vrot.lane.b32.xlu0 %v391, 32
    %v510 = vpop.permute.xlu0 %509
    %v511 = vrot.slane %v389, 1
    %512 = vrot.lane.b32.xlu0 %v511, 64
    %v513 = vpop.permute.xlu0 %512
    %v514 = vrot.slane %v391, 1
    %515 = vrot.lane.b32.xlu0 %v514, 96
    %v516 = vpop.permute.xlu0 %515
    %v519 = vsel %vm432, %v385, %v502
    %v521 = vsel %vm436, %v519, %v505
    %v523 = vsel %vm439, %v521, %v508
    %v526 = vsel %vm432, %v389, %v510
    %v528 = vsel %vm436, %v526, %v513
    %v530 = vsel %vm439, %v528, %v516
    %v535 = vrot.slane %v441, 1
    %v536 = vrot.slane %v448, 1
    %v537 = vrot.slane %v493, 1
    %v538 = vrot.slane %v500, 1
    %v541 = vrot.slane %v523, 2
    %v542 = vrot.slane %v530, 2
    %v543 = vrot.slane %v493, 2
    %v544 = vrot.slane %v500, 2
    %vm549 = vcmask 1042432
    %v551 = vsel %vm549, %v441, %v535
    %v553 = vsel %vm549, %v448, %v536
    %v555 = vsel %vm549, %v455, %v537
    %v557 = vsel %vm549, %v462, %v538
    %vm558 = vcmask 1045504
    %v560 = vsel %vm558, %v551, %v541
    %v563 = vsel %vm558, %v553, %v542
    %v566 = vsel %vm558, %v555, %v543
    %v569 = vsel %vm558, %v557, %v544
    %v571 = vld [vmem:[%s3] sm:$0xf]
    %v572 = vld [vmem:[%s3 + $0x4] sm:$0xf]
    %v573 = vld [vmem:[%s3 + $0x8] sm:$0xf]
    %v574 = vld [vmem:[%s3 + $0xc] sm:$0xf]
    %v575 = vld [vmem:[%s3 + $0x10] sm:$0xf]
    %v576 = vld [vmem:[%s3 + $0x14] sm:$0xf]
    %v577 = vld [vmem:[%s3 + $0x18] sm:$0xf]
    %v578 = vld [vmem:[%s3 + $0x1c] sm:$0xf]
    %v579 = vld [vmem:[%s3 + $0x20] sm:$0xf]
    %v580 = vld [vmem:[%s3 + $0x24] sm:$0xf]
    %v581 = vld [vmem:[%s3 + $0x28] sm:$0xf]
    %v582 = vld [vmem:[%s3 + $0x2c] sm:$0xf]
    %v583 = vld [vmem:[%s3 + $0x30] sm:$0xf]
    %v584 = vld [vmem:[%s3 + $0x34] sm:$0xf]
    %v585 = vld [vmem:[%s3 + $0x38] sm:$0xf]
    %v586 = vld [vmem:[%s3 + $0x3c] sm:$0xf]
    %v587 = vld [vmem:[%s3 + $0x40] sm:$0xf]
    %v588 = vld [vmem:[%s3 + $0x44] sm:$0xf]
    %v589 = vld [vmem:[%s3 + $0x48] sm:$0xf]
    %v590 = vld [vmem:[%s3 + $0x4c] sm:$0xf]
    %v591 = vld [vmem:[%s3 + $0x50] sm:$0xf]
    %v592 = vld [vmem:[%s3 + $0x54] sm:$0xf]
    %v593 = vld [vmem:[%s3 + $0x58] sm:$0xf]
    %v594 = vld [vmem:[%s3 + $0x5c] sm:$0xf]
    %v595 = vld [vmem:[%s3 + $0x60] sm:$0xf]
    %v596 = vld [vmem:[%s3 + $0x64] sm:$0xf]
    %v597 = vld [vmem:[%s3 + $0x68] sm:$0xf]
    %v598 = vld [vmem:[%s3 + $0x6c] sm:$0xf]
    %v599 = vld [vmem:[%s3 + $0x70] sm:$0xf]
    %v600 = vld [vmem:[%s3 + $0x74] sm:$0xf]
    %v601 = vld [vmem:[%s3 + $0x78] sm:$0xf]
    %v602 = vld [vmem:[%s3 + $0x7c] sm:$0xf]
    %v603 = vld [vmem:[%s3 + $0x80] sm:$0xf]
    %v604 = vld [vmem:[%s3 + $0x84] sm:$0xf]
    %v605 = vld [vmem:[%s3 + $0x88] sm:$0xf]
    %v606 = vld [vmem:[%s3 + $0x8c] sm:$0xf]
    %v607 = vld [vmem:[%s3 + $0x90] sm:$0xf]
    %v608 = vld [vmem:[%s3 + $0x94] sm:$0xf]
    %v609 = vld [vmem:[%s3 + $0x98] sm:$0xf]
    %v610 = vld [vmem:[%s3 + $0x9c] sm:$0xf]
    %v611 = vld [vmem:[%s3 + $0xa0] sm:$0xf]
    %v612 = vld [vmem:[%s3 + $0xa4] sm:$0xf]
    %v613 = vld [vmem:[%s3 + $0xa8] sm:$0xf]
    %v614 = vld [vmem:[%s3 + $0xac] sm:$0xf]
    %v615 = vld [vmem:[%s3 + $0xb0] sm:$0xf]
    %v616 = vld [vmem:[%s3 + $0xb4] sm:$0xf]
    %v617 = vld [vmem:[%s3 + $0xb8] sm:$0xf]
    %v618 = vld [vmem:[%s3 + $0xbc] sm:$0xf]
    %v619 = vld [vmem:[%s3 + $0xc0] sm:$0xf]
    %v620 = vld [vmem:[%s3 + $0xc4] sm:$0xf]
    %v621 = vld [vmem:[%s3 + $0xc8] sm:$0xf]
    %v622 = vld [vmem:[%s3 + $0xcc] sm:$0xf]
    %v623 = vld [vmem:[%s3 + $0xd0] sm:$0xf]
    %v624 = vld [vmem:[%s3 + $0xd4] sm:$0xf]
    %v625 = vld [vmem:[%s3 + $0xd8] sm:$0xf]
    %v626 = vld [vmem:[%s3 + $0xdc] sm:$0xf]
    %v627 = vld [vmem:[%s3 + $0xe0] sm:$0xf]
    %v628 = vld [vmem:[%s3 + $0xe4] sm:$0xf]
    %v629 = vld [vmem:[%s3 + $0xe8] sm:$0xf]
    %v630 = vld [vmem:[%s3 + $0xec] sm:$0xf]
    %v631 = vld [vmem:[%s3 + $0xf0] sm:$0xf]
    %v632 = vld [vmem:[%s3 + $0xf4] sm:$0xf]
    %v633 = vld [vmem:[%s3 + $0xf8] sm:$0xf]
    %v634 = vld [vmem:[%s3 + $0xfc] sm:$0xf]
    %v635 = vld [vmem:[%s4] sm:$0x1]
    %v637 = vlaneseq
    %v638 = vshrl.u32 %v637, 7
    %v639 = vsub.s32 0, %v638
    %v640 = vrot.slane %v635, %v639
    %v706 = vunpack.c.l.b16 %v571
    %v707 = vunpack.c.l.b16 %v572
    %v708 = vunpack.c.l.b16 %v573
    %v709 = vunpack.c.l.b16 %v574
    %v710 = vunpack.c.l.b16 %v575
    %v711 = vunpack.c.l.b16 %v576
    %v712 = vunpack.c.l.b16 %v577
    %v713 = vunpack.c.l.b16 %v578
    %v714 = vunpack.c.l.b16 %v579
    %v715 = vunpack.c.l.b16 %v580
    %v716 = vunpack.c.l.b16 %v581
    %v717 = vunpack.c.l.b16 %v582
    %v718 = vunpack.c.l.b16 %v583
    %v719 = vunpack.c.l.b16 %v584
    %v720 = vunpack.c.l.b16 %v585
    %v721 = vunpack.c.l.b16 %v586
    %v722 = vunpack.c.l.b16 %v587
    %v723 = vunpack.c.l.b16 %v588
    %v724 = vunpack.c.l.b16 %v589
    %v725 = vunpack.c.l.b16 %v590
    %v726 = vunpack.c.l.b16 %v591
    %v727 = vunpack.c.l.b16 %v592
    %v728 = vunpack.c.l.b16 %v593
    %v729 = vunpack.c.l.b16 %v594
    %v730 = vunpack.c.l.b16 %v595
    %v731 = vunpack.c.l.b16 %v596
    %v732 = vunpack.c.l.b16 %v597
    %v733 = vunpack.c.l.b16 %v598
    %v734 = vunpack.c.l.b16 %v599
    %v735 = vunpack.c.l.b16 %v600
    %v736 = vunpack.c.l.b16 %v601
    %v737 = vunpack.c.l.b16 %v602
    %v738 = vunpack.c.l.b16 %v603
    %v739 = vunpack.c.l.b16 %v604
    %v740 = vunpack.c.l.b16 %v605
    %v741 = vunpack.c.l.b16 %v606
    %v742 = vunpack.c.l.b16 %v607
    %v743 = vunpack.c.l.b16 %v608
    %v744 = vunpack.c.l.b16 %v609
    %v745 = vunpack.c.l.b16 %v610
    %v746 = vunpack.c.l.b16 %v611
    %v747 = vunpack.c.l.b16 %v612
    %v748 = vunpack.c.l.b16 %v613
    %v749 = vunpack.c.l.b16 %v614
    %v750 = vunpack.c.l.b16 %v615
    %v751 = vunpack.c.l.b16 %v616
    %v752 = vunpack.c.l.b16 %v617
    %v753 = vunpack.c.l.b16 %v618
    %v754 = vunpack.c.l.b16 %v619
    %v755 = vunpack.c.l.b16 %v620
    %v756 = vunpack.c.l.b16 %v621
    %v757 = vunpack.c.l.b16 %v622
    %v758 = vunpack.c.l.b16 %v623
    %v759 = vunpack.c.l.b16 %v624
    %v760 = vunpack.c.l.b16 %v625
    %v761 = vunpack.c.l.b16 %v626
    %v762 = vunpack.c.l.b16 %v627
    %v763 = vunpack.c.l.b16 %v628
    %v764 = vunpack.c.l.b16 %v629
    %v765 = vunpack.c.l.b16 %v630
    %v766 = vunpack.c.l.b16 %v631
    %v767 = vunpack.c.l.b16 %v632
    %v768 = vunpack.c.l.b16 %v633
    %v769 = vunpack.c.l.b16 %v634
    %v770 = vpack.c.b16 %v707, %v706
    %v771 = vpack.c.b16 %v709, %v708
    %v772 = vpack.c.b16 %v711, %v710
    %v773 = vpack.c.b16 %v713, %v712
    %v774 = vpack.c.b16 %v715, %v714
    %v775 = vpack.c.b16 %v717, %v716
    %v776 = vpack.c.b16 %v719, %v718
    %v777 = vpack.c.b16 %v721, %v720
    %v778 = vpack.c.b16 %v723, %v722
    %v779 = vpack.c.b16 %v725, %v724
    %v780 = vpack.c.b16 %v727, %v726
    %v781 = vpack.c.b16 %v729, %v728
    %v782 = vpack.c.b16 %v731, %v730
    %v783 = vpack.c.b16 %v733, %v732
    %v784 = vpack.c.b16 %v735, %v734
    %v785 = vpack.c.b16 %v737, %v736
    %v786 = vpack.c.b16 %v739, %v738
    %v787 = vpack.c.b16 %v741, %v740
    %v788 = vpack.c.b16 %v743, %v742
    %v789 = vpack.c.b16 %v745, %v744
    %v790 = vpack.c.b16 %v747, %v746
    %v791 = vpack.c.b16 %v749, %v748
    %v792 = vpack.c.b16 %v751, %v750
    %v793 = vpack.c.b16 %v753, %v752
    %v794 = vpack.c.b16 %v755, %v754
    %v795 = vpack.c.b16 %v757, %v756
    %v796 = vpack.c.b16 %v759, %v758
    %v797 = vpack.c.b16 %v761, %v760
    %v798 = vpack.c.b16 %v763, %v762
    %v799 = vpack.c.b16 %v765, %v764
    %v800 = vpack.c.b16 %v767, %v766
    %v801 = vpack.c.b16 %v769, %v768
    %834 = vmatprep.subr.bf16.mxu0 0
    %835 = vmatpush1.bf16.msra.mxu0 %v770
    %836 = vmatprep.subr.bf16.mxu0 0
    %837 = vmatpush1.bf16.msra.mxu0 %v771
    %838 = vmatprep.subr.bf16.mxu0 0
    %839 = vmatpush1.bf16.msra.mxu0 %v772
    %840 = vmatprep.subr.bf16.mxu0 0
    %841 = vmatpush1.bf16.msra.mxu0 %v773
    %842 = vmatprep.subr.bf16.mxu0 0
    %843 = vmatpush1.bf16.msra.mxu0 %v774
    %844 = vmatprep.subr.bf16.mxu0 0
    %845 = vmatpush1.bf16.msra.mxu0 %v775
    %846 = vmatprep.subr.bf16.mxu0 0
    %847 = vmatpush1.bf16.msra.mxu0 %v776
    %848 = vmatprep.subr.bf16.mxu0 0
    %849 = vmatpush1.bf16.msra.mxu0 %v777
    %850 = vmatprep.subr.bf16.mxu0 0
    %851 = vmatpush1.bf16.msra.mxu0 %v778
    %852 = vmatprep.subr.bf16.mxu0 0
    %853 = vmatpush1.bf16.msra.mxu0 %v779
    %854 = vmatprep.subr.bf16.mxu0 0
    %855 = vmatpush1.bf16.msra.mxu0 %v780
    %856 = vmatprep.subr.bf16.mxu0 0
    %857 = vmatpush1.bf16.msra.mxu0 %v781
    %858 = vmatprep.subr.bf16.mxu0 0
    %859 = vmatpush1.bf16.msra.mxu0 %v782
    %860 = vmatprep.subr.bf16.mxu0 0
    %861 = vmatpush1.bf16.msra.mxu0 %v783
    %862 = vmatprep.subr.bf16.mxu0 0
    %863 = vmatpush1.bf16.msra.mxu0 %v784
    %864 = vmatprep.subr.bf16.mxu0 0
    %865 = vmatpush1.bf16.msra.mxu0 %v785
    %866 = vmatprep.mubr.bf16.mxu0 %v563
    %867 = vmatmul.mubr.bf16.gmra.mrb[0].mxu0 %v560
    %v868 = vpop.f32.mrb[0].mxu0
    %v869 = vadd.f32 %v640, %v868
    %v870 = vpop.f32.mrb[0].mxu0
    %v871 = vpop.f32.mrb[0].mxu0
    %v872 = vadd.f32 %v640, %v871
    %v873 = vpop.f32.mrb[0].mxu0
    %874 = vmatprep.mubr.bf16.mxu0 %v542
    %875 = vmatmul.mubr.bf16.gmra.mrb[0].mxu0 %v541
    %v876 = vpop.f32.mrb[0].mxu0
    %v877 = vadd.f32 %v640, %v876
    %v878 = vpop.f32.mrb[0].mxu0
    %v879 = vpop.f32.mrb[0].mxu0
    %v880 = vpop.f32.mrb[0].mxu0
    %881 = vdwg.mxu0
    %882 = vmatprep.subr.bf16.mxu0 0
    %883 = vmatpush1.bf16.msra.mxu0 %v786
    %884 = vmatprep.subr.bf16.mxu0 0
    %885 = vmatpush1.bf16.msra.mxu0 %v787
    %886 = vmatprep.subr.bf16.mxu0 0
    %887 = vmatpush1.bf16.msra.mxu0 %v788
    %888 = vmatprep.subr.bf16.mxu0 0
    %889 = vmatpush1.bf16.msra.mxu0 %v789
    %890 = vmatprep.subr.bf16.mxu0 0
    %891 = vmatpush1.bf16.msra.mxu0 %v790
    %892 = vmatprep.subr.bf16.mxu0 0
    %893 = vmatpush1.bf16.msra.mxu0 %v791
    %894 = vmatprep.subr.bf16.mxu0 0
    %895 = vmatpush1.bf16.msra.mxu0 %v792
    %896 = vmatprep.subr.bf16.mxu0 0
    %897 = vmatpush1.bf16.msra.mxu0 %v793
    %898 = vmatprep.subr.bf16.mxu0 0
    %899 = vmatpush1.bf16.msra.mxu0 %v794
    %900 = vmatprep.subr.bf16.mxu0 0
    %901 = vmatpush1.bf16.msra.mxu0 %v795
    %902 = vmatprep.subr.bf16.mxu0 0
    %903 = vmatpush1.bf16.msra.mxu0 %v796
    %904 = vmatprep.subr.bf16.mxu0 0
    %905 = vmatpush1.bf16.msra.mxu0 %v797
    %906 = vmatprep.subr.bf16.mxu0 0
    %907 = vmatpush1.bf16.msra.mxu0 %v798
    %908 = vmatprep.subr.bf16.mxu0 0
    %909 = vmatpush1.bf16.msra.mxu0 %v799
    %910 = vmatprep.subr.bf16.mxu0 0
    %911 = vmatpush1.bf16.msra.mxu0 %v800
    %912 = vmatprep.subr.bf16.mxu0 0
    %913 = vmatpush1.bf16.msra.mxu0 %v801
    %914 = vmatprep.mubr.bf16.mxu0 %v569
    %915 = vmatmul.mubr.bf16.gmra.mrb[0].mxu0 %v566
    %v916 = vpop.f32.mrb[0].mxu0
    %v917 = vadd.f32 %v869, %v916
    %v918 = vpop.f32.mrb[0].mxu0
    %v919 = vpop.f32.mrb[0].mxu0
    %v920 = vadd.f32 %v872, %v919
    %v921 = vpop.f32.mrb[0].mxu0
    %922 = vmatprep.mubr.bf16.mxu0 %v544
    %923 = vmatmul.mubr.bf16.gmra.mrb[0].mxu0 %v543
    %v924 = vpop.f32.mrb[0].mxu0
    %v925 = vadd.f32 %v877, %v924
    %v926 = vpop.f32.mrb[0].mxu0
    %v927 = vpop.f32.mrb[0].mxu0
    %v928 = vpop.f32.mrb[0].mxu0
    %929 = vdwg.mxu0
    %v930 = vmax.f32 %v917, 0.0
    %v931 = vmax.f32 %v920, 0.0
    %v932 = vmax.f32 %v925, 0.0
    %v933 = vpack.c.bf16 %v931, %v930
    %v934 = vpack.c.bf16 %v932, %v932
    %v936 = vrot.slane %v933, 1
    %937 = vrot.lane.b32.xlu0 %v936, 64
    %v938 = vpop.permute.xlu0 %937
    %v939 = vrot.slane %v933, 2
    %v940 = vrot.slane %v933, 3
    %941 = vrot.lane.b32.xlu0 %v940, 64
    %v942 = vpop.permute.xlu0 %941
    %v943 = vrot.slane %v933, 4
    %v944 = vrot.slane %v933, 5
    %945 = vrot.lane.b32.xlu0 %v944, 64
    %v946 = vpop.permute.xlu0 %945
    %v947 = vrot.slane %v933, 6
    %v948 = vrot.slane %v933, 7
    %949 = vrot.lane.b32.xlu0 %v948, 64
    %v950 = vpop.permute.xlu0 %949
    %v953 = vsel %vm436, %v933, %v938
    %v957 = vsel %vm436, %v939, %v942
    %v961 = vsel %vm436, %v943, %v946
    %v965 = vsel %vm436, %v947, %v950
    %v967 = vld [vmem:[%s5] sm:$0xf]
    %v968 = vld [vmem:[%s5 + $0x4] sm:$0xf]
    %v969 = vld [vmem:[%s5 + $0x8] sm:$0xf]
    %v970 = vld [vmem:[%s5 + $0xc] sm:$0xf]
    %v971 = vld [vmem:[%s5 + $0x10] sm:$0xf]
    %v972 = vld [vmem:[%s5 + $0x14] sm:$0xf]
    %v973 = vld [vmem:[%s5 + $0x18] sm:$0xf]
    %v974 = vld [vmem:[%s5 + $0x1c] sm:$0xf]
    %v975 = vld [vmem:[%s5 + $0x20] sm:$0xf]
    %v976 = vld [vmem:[%s5 + $0x24] sm:$0xf]
    %v977 = vld [vmem:[%s5 + $0x28] sm:$0xf]
    %v978 = vld [vmem:[%s5 + $0x2c] sm:$0xf]
    %v979 = vld [vmem:[%s5 + $0x30] sm:$0xf]
    %v980 = vld [vmem:[%s5 + $0x34] sm:$0xf]
    %v981 = vld [vmem:[%s5 + $0x38] sm:$0xf]
    %v982 = vld [vmem:[%s5 + $0x3c] sm:$0xf]
    %v983 = vld [vmem:[%s5 + $0x40] sm:$0xf]
    %v984 = vld [vmem:[%s5 + $0x44] sm:$0xf]
    %v985 = vld [vmem:[%s5 + $0x48] sm:$0xf]
    %v986 = vld [vmem:[%s5 + $0x4c] sm:$0xf]
    %v987 = vld [vmem:[%s5 + $0x50] sm:$0xf]
    %v988 = vld [vmem:[%s5 + $0x54] sm:$0xf]
    %v989 = vld [vmem:[%s5 + $0x58] sm:$0xf]
    %v990 = vld [vmem:[%s5 + $0x5c] sm:$0xf]
    %v991 = vld [vmem:[%s5 + $0x60] sm:$0xf]
    %v992 = vld [vmem:[%s5 + $0x64] sm:$0xf]
    %v993 = vld [vmem:[%s5 + $0x68] sm:$0xf]
    %v994 = vld [vmem:[%s5 + $0x6c] sm:$0xf]
    %v995 = vld [vmem:[%s5 + $0x70] sm:$0xf]
    %v996 = vld [vmem:[%s5 + $0x74] sm:$0xf]
    %v997 = vld [vmem:[%s5 + $0x78] sm:$0xf]
    %v998 = vld [vmem:[%s5 + $0x7c] sm:$0xf]
    %v999 = vld [vmem:[%s5 + $0x80] sm:$0xf]
    %v1000 = vld [vmem:[%s5 + $0x84] sm:$0xf]
    %v1001 = vld [vmem:[%s5 + $0x88] sm:$0xf]
    %v1002 = vld [vmem:[%s5 + $0x8c] sm:$0xf]
    %v1003 = vld [vmem:[%s5 + $0x90] sm:$0xf]
    %v1004 = vld [vmem:[%s5 + $0x94] sm:$0xf]
    %v1005 = vld [vmem:[%s5 + $0x98] sm:$0xf]
    %v1006 = vld [vmem:[%s5 + $0x9c] sm:$0xf]
    %v1007 = vld [vmem:[%s5 + $0xa0] sm:$0xf]
    %v1008 = vld [vmem:[%s5 + $0xa4] sm:$0xf]
    %v1009 = vld [vmem:[%s5 + $0xa8] sm:$0xf]
    %v1010 = vld [vmem:[%s5 + $0xac] sm:$0xf]
    %v1011 = vld [vmem:[%s5 + $0xb0] sm:$0xf]
    %v1012 = vld [vmem:[%s5 + $0xb4] sm:$0xf]
    %v1013 = vld [vmem:[%s5 + $0xb8] sm:$0xf]
    %v1014 = vld [vmem:[%s5 + $0xbc] sm:$0xf]
    %v1015 = vld [vmem:[%s5 + $0xc0] sm:$0xf]
    %v1016 = vld [vmem:[%s5 + $0xc4] sm:$0xf]
    %v1017 = vld [vmem:[%s5 + $0xc8] sm:$0xf]
    %v1018 = vld [vmem:[%s5 + $0xcc] sm:$0xf]
    %v1019 = vld [vmem:[%s5 + $0xd0] sm:$0xf]
    %v1020 = vld [vmem:[%s5 + $0xd4] sm:$0xf]
    %v1021 = vld [vmem:[%s5 + $0xd8] sm:$0xf]
    %v1022 = vld [vmem:[%s5 + $0xdc] sm:$0xf]
    %v1023 = vld [vmem:[%s5 + $0xe0] sm:$0xf]
    %v1024 = vld [vmem:[%s5 + $0xe4] sm:$0xf]
    %v1025 = vld [vmem:[%s5 + $0xe8] sm:$0xf]
    %v1026 = vld [vmem:[%s5 + $0xec] sm:$0xf]
    %v1027 = vld [vmem:[%s5 + $0xf0] sm:$0xf]
    %v1028 = vld [vmem:[%s5 + $0xf4] sm:$0xf]
    %v1029 = vld [vmem:[%s5 + $0xf8] sm:$0xf]
    %v1030 = vld [vmem:[%s5 + $0xfc] sm:$0xf]
    %v1031 = vld [vmem:[%s5 + $0x100] sm:$0xf]
    %v1032 = vld [vmem:[%s5 + $0x104] sm:$0xf]
    %v1033 = vld [vmem:[%s5 + $0x108] sm:$0xf]
    %v1034 = vld [vmem:[%s5 + $0x10c] sm:$0xf]
    %v1035 = vld [vmem:[%s5 + $0x110] sm:$0xf]
    %v1036 = vld [vmem:[%s5 + $0x114] sm:$0xf]
    %v1037 = vld [vmem:[%s5 + $0x118] sm:$0xf]
    %v1038 = vld [vmem:[%s5 + $0x11c] sm:$0xf]
    %v1039 = vld [vmem:[%s6] sm:$0x1]
    %v1041 = vlaneseq
    %v1042 = vshrl.u32 %v1041, 7
    %v1043 = vsub.s32 0, %v1042
    %v1044 = vrot.slane %v1039, %v1043
    %v1118 = vunpack.c.l.b16 %v967
    %v1119 = vunpack.c.l.b16 %v968
    %v1120 = vunpack.c.l.b16 %v969
    %v1121 = vunpack.c.l.b16 %v970
    %v1122 = vunpack.c.l.b16 %v971
    %v1123 = vunpack.c.l.b16 %v972
    %v1124 = vunpack.c.l.b16 %v973
    %v1125 = vunpack.c.l.b16 %v974
    %v1126 = vunpack.c.l.b16 %v975
    %v1127 = vunpack.c.l.b16 %v976
    %v1128 = vunpack.c.l.b16 %v977
    %v1129 = vunpack.c.l.b16 %v978
    %v1130 = vunpack.c.l.b16 %v979
    %v1131 = vunpack.c.l.b16 %v980
    %v1132 = vunpack.c.l.b16 %v981
    %v1133 = vunpack.c.l.b16 %v982
    %v1134 = vunpack.c.l.b16 %v983
    %v1135 = vunpack.c.l.b16 %v984
    %v1136 = vunpack.c.l.b16 %v985
    %v1137 = vunpack.c.l.b16 %v986
    %v1138 = vunpack.c.l.b16 %v987
    %v1139 = vunpack.c.l.b16 %v988
    %v1140 = vunpack.c.l.b16 %v989
    %v1141 = vunpack.c.l.b16 %v990
    %v1142 = vunpack.c.l.b16 %v991
    %v1143 = vunpack.c.l.b16 %v992
    %v1144 = vunpack.c.l.b16 %v993
    %v1145 = vunpack.c.l.b16 %v994
    %v1146 = vunpack.c.l.b16 %v995
    %v1147 = vunpack.c.l.b16 %v996
    %v1148 = vunpack.c.l.b16 %v997
    %v1149 = vunpack.c.l.b16 %v998
    %v1150 = vunpack.c.l.b16 %v999
    %v1151 = vunpack.c.l.b16 %v1000
    %v1152 = vunpack.c.l.b16 %v1001
    %v1153 = vunpack.c.l.b16 %v1002
    %v1154 = vunpack.c.l.b16 %v1003
    %v1155 = vunpack.c.l.b16 %v1004
    %v1156 = vunpack.c.l.b16 %v1005
    %v1157 = vunpack.c.l.b16 %v1006
    %v1158 = vunpack.c.l.b16 %v1007
    %v1159 = vunpack.c.l.b16 %v1008
    %v1160 = vunpack.c.l.b16 %v1009
    %v1161 = vunpack.c.l.b16 %v1010
    %v1162 = vunpack.c.l.b16 %v1011
    %v1163 = vunpack.c.l.b16 %v1012
    %v1164 = vunpack.c.l.b16 %v1013
    %v1165 = vunpack.c.l.b16 %v1014
    %v1166 = vunpack.c.l.b16 %v1015
    %v1167 = vunpack.c.l.b16 %v1016
    %v1168 = vunpack.c.l.b16 %v1017
    %v1169 = vunpack.c.l.b16 %v1018
    %v1170 = vunpack.c.l.b16 %v1019
    %v1171 = vunpack.c.l.b16 %v1020
    %v1172 = vunpack.c.l.b16 %v1021
    %v1173 = vunpack.c.l.b16 %v1022
    %v1174 = vunpack.c.l.b16 %v1023
    %v1175 = vunpack.c.l.b16 %v1024
    %v1176 = vunpack.c.l.b16 %v1025
    %v1177 = vunpack.c.l.b16 %v1026
    %v1178 = vunpack.c.l.b16 %v1027
    %v1179 = vunpack.c.l.b16 %v1028
    %v1180 = vunpack.c.l.b16 %v1029
    %v1181 = vunpack.c.l.b16 %v1030
    %v1182 = vunpack.c.l.b16 %v1031
    %v1183 = vunpack.c.l.b16 %v1032
    %v1184 = vunpack.c.l.b16 %v1033
    %v1185 = vunpack.c.l.b16 %v1034
    %v1186 = vunpack.c.l.b16 %v1035
    %v1187 = vunpack.c.l.b16 %v1036
    %v1188 = vunpack.c.l.b16 %v1037
    %v1189 = vunpack.c.l.b16 %v1038
    %v1190 = vpack.c.b16 %v1119, %v1118
    %v1191 = vpack.c.b16 %v1121, %v1120
    %v1192 = vpack.c.b16 %v1123, %v1122
    %v1193 = vpack.c.b16 %v1125, %v1124
    %v1194 = vpack.c.b16 %v1127, %v1126
    %v1195 = vpack.c.b16 %v1129, %v1128
    %v1196 = vpack.c.b16 %v1131, %v1130
    %v1197 = vpack.c.b16 %v1133, %v1132
    %v1198 = vpack.c.b16 %v1135, %v1134
    %v1199 = vpack.c.b16 %v1137, %v1136
    %v1200 = vpack.c.b16 %v1139, %v1138
    %v1201 = vpack.c.b16 %v1141, %v1140
    %v1202 = vpack.c.b16 %v1143, %v1142
    %v1203 = vpack.c.b16 %v1145, %v1144
    %v1204 = vpack.c.b16 %v1147, %v1146
    %v1205 = vpack.c.b16 %v1149, %v1148
    %v1206 = vpack.c.b16 %v1151, %v1150
    %v1207 = vpack.c.b16 %v1153, %v1152
    %v1208 = vpack.c.b16 %v1155, %v1154
    %v1209 = vpack.c.b16 %v1157, %v1156
    %v1210 = vpack.c.b16 %v1159, %v1158
    %v1211 = vpack.c.b16 %v1161, %v1160
    %v1212 = vpack.c.b16 %v1163, %v1162
    %v1213 = vpack.c.b16 %v1165, %v1164
    %v1214 = vpack.c.b16 %v1167, %v1166
    %v1215 = vpack.c.b16 %v1169, %v1168
    %v1216 = vpack.c.b16 %v1171, %v1170
    %v1217 = vpack.c.b16 %v1173, %v1172
    %v1218 = vpack.c.b16 %v1175, %v1174
    %v1219 = vpack.c.b16 %v1177, %v1176
    %v1220 = vpack.c.b16 %v1179, %v1178
    %v1221 = vpack.c.b16 %v1181, %v1180
    %v1222 = vpack.c.b16 %v1183, %v1182
    %v1223 = vpack.c.b16 %v1185, %v1184
    %v1224 = vpack.c.b16 %v1187, %v1186
    %v1225 = vpack.c.b16 %v1189, %v1188
    %v1263 = vsel %vm436, %v934, 0
    %1265 = vmatprep.subr.bf16.mxu0 0
    %1266 = vmatpush1.bf16.msra.mxu0 %v1190
    %1267 = vmatprep.subr.bf16.mxu0 0
    %1268 = vmatpush1.bf16.msra.mxu0 %v1191
    %1269 = vmatprep.subr.bf16.mxu0 0
    %1270 = vmatpush1.bf16.msra.mxu0 %v1192
    %1271 = vmatprep.subr.bf16.mxu0 0
    %1272 = vmatpush1.bf16.msra.mxu0 %v1193
    %1273 = vmatprep.subr.bf16.mxu0 0
    %1274 = vmatpush1.bf16.msra.mxu0 %v1194
    %1275 = vmatprep.subr.bf16.mxu0 0
    %1276 = vmatpush1.bf16.msra.mxu0 %v1195
    %1277 = vmatprep.subr.bf16.mxu0 0
    %1278 = vmatpush1.bf16.msra.mxu0 %v1196
    %1279 = vmatprep.subr.bf16.mxu0 0
    %1280 = vmatpush1.bf16.msra.mxu0 %v1197
    %1281 = vmatprep.subr.bf16.mxu0 0
    %1282 = vmatpush1.bf16.msra.mxu0 %v1198
    %1283 = vmatprep.subr.bf16.mxu0 0
    %1284 = vmatpush1.bf16.msra.mxu0 %v1199
    %1285 = vmatprep.subr.bf16.mxu0 0
    %1286 = vmatpush1.bf16.msra.mxu0 %v1200
    %1287 = vmatprep.subr.bf16.mxu0 0
    %1288 = vmatpush1.bf16.msra.mxu0 %v1201
    %1289 = vmatprep.subr.bf16.mxu0 0
    %1290 = vmatpush1.bf16.msra.mxu0 %v1202
    %1291 = vmatprep.subr.bf16.mxu0 0
    %1292 = vmatpush1.bf16.msra.mxu0 %v1203
    %1293 = vmatprep.subr.bf16.mxu0 0
    %1294 = vmatpush1.bf16.msra.mxu0 %v1204
    %1295 = vmatprep.subr.bf16.mxu0 0
    %1296 = vmatpush1.bf16.msra.mxu0 %v1205
    %1297 = vmatprep.mubr.bf16.mxu0 %v957
    %1298 = vmatmul.mubr.bf16.gmra.mrb[0].mxu0 %v953
    %v1299 = vpop.f32.mrb[0].mxu0
    %v1300 = vadd.f32 %v1044, %v1299
    %v1301 = vpop.f32.mrb[0].mxu0
    %v1302 = vpop.f32.mrb[0].mxu0
    %v1303 = vpop.f32.mrb[0].mxu0
    %1304 = vdwg.mxu0
    %1305 = vmatprep.subr.bf16.mxu0 0
    %1306 = vmatpush1.bf16.msra.mxu0 %v1206
    %1307 = vmatprep.subr.bf16.mxu0 0
    %1308 = vmatpush1.bf16.msra.mxu0 %v1207
    %1309 = vmatprep.subr.bf16.mxu0 0
    %1310 = vmatpush1.bf16.msra.mxu0 %v1208
    %1311 = vmatprep.subr.bf16.mxu0 0
    %1312 = vmatpush1.bf16.msra.mxu0 %v1209
    %1313 = vmatprep.subr.bf16.mxu0 0
    %1314 = vmatpush1.bf16.msra.mxu0 %v1210
    %1315 = vmatprep.subr.bf16.mxu0 0
    %1316 = vmatpush1.bf16.msra.mxu0 %v1211
    %1317 = vmatprep.subr.bf16.mxu0 0
    %1318 = vmatpush1.bf16.msra.mxu0 %v1212
    %1319 = vmatprep.subr.bf16.mxu0 0
    %1320 = vmatpush1.bf16.msra.mxu0 %v1213
    %1321 = vmatprep.subr.bf16.mxu0 0
    %1322 = vmatpush1.bf16.msra.mxu0 %v1214
    %1323 = vmatprep.subr.bf16.mxu0 0
    %1324 = vmatpush1.bf16.msra.mxu0 %v1215
    %1325 = vmatprep.subr.bf16.mxu0 0
    %1326 = vmatpush1.bf16.msra.mxu0 %v1216
    %1327 = vmatprep.subr.bf16.mxu0 0
    %1328 = vmatpush1.bf16.msra.mxu0 %v1217
    %1329 = vmatprep.subr.bf16.mxu0 0
    %1330 = vmatpush1.bf16.msra.mxu0 %v1218
    %1331 = vmatprep.subr.bf16.mxu0 0
    %1332 = vmatpush1.bf16.msra.mxu0 %v1219
    %1333 = vmatprep.subr.bf16.mxu0 0
    %1334 = vmatpush1.bf16.msra.mxu0 %v1220
    %1335 = vmatprep.subr.bf16.mxu0 0
    %1336 = vmatpush1.bf16.msra.mxu0 %v1221
    %1337 = vmatprep.mubr.bf16.mxu0 %v965
    %1338 = vmatmul.mubr.bf16.gmra.mrb[0].mxu0 %v961
    %v1339 = vpop.f32.mrb[0].mxu0
    %v1340 = vadd.f32 %v1300, %v1339
    %v1341 = vpop.f32.mrb[0].mxu0
    %v1342 = vpop.f32.mrb[0].mxu0
    %v1343 = vpop.f32.mrb[0].mxu0
    %1344 = vdwg.mxu0
    %1345 = vmatprep.subr.bf16.mxu0 0
    %1346 = vmatpush1.bf16.msra.mxu0 %v1222
    %1347 = vmatprep.subr.bf16.mxu0 0
    %1348 = vmatpush1.bf16.msra.mxu0 %v1223
    %1349 = vmatprep.subr.bf16.mxu0 0
    %1350 = vmatpush1.bf16.msra.mxu0 %v1224
    %1351 = vmatprep.subr.bf16.mxu0 0
    %1352 = vmatpush1.bf16.msra.mxu0 %v1225
    %1353 = vmatprep.subr.bf16.mxu0 0
    %1354 = vmatpush1.bf16.msra.mxu0 0
    %1355 = vmatprep.subr.bf16.mxu0 0
    %1356 = vmatpush1.bf16.msra.mxu0 0
    %1357 = vmatprep.subr.bf16.mxu0 0
    %1358 = vmatpush1.bf16.msra.mxu0 0
    %1359 = vmatprep.subr.bf16.mxu0 0
    %1360 = vmatpush1.bf16.msra.mxu0 0
    %1361 = vmatprep.subr.bf16.mxu0 0
    %1362 = vmatpush1.bf16.msra.mxu0 0
    %1363 = vmatprep.subr.bf16.mxu0 0
    %1364 = vmatpush1.bf16.msra.mxu0 0
    %1365 = vmatprep.subr.bf16.mxu0 0
    %1366 = vmatpush1.bf16.msra.mxu0 0
    %1367 = vmatprep.subr.bf16.mxu0 0
    %1368 = vmatpush1.bf16.msra.mxu0 0
    %1369 = vmatprep.subr.bf16.mxu0 0
    %1370 = vmatpush1.bf16.msra.mxu0 0
    %1371 = vmatprep.subr.bf16.mxu0 0
    %1372 = vmatpush1.bf16.msra.mxu0 0
    %1373 = vmatprep.subr.bf16.mxu0 0
    %1374 = vmatpush1.bf16.msra.mxu0 0
    %1375 = vmatprep.subr.bf16.mxu0 0
    %1376 = vmatpush1.bf16.msra.mxu0 0
    %1377 = vmatprep.mubr.bf16.mxu0 0
    %1378 = vmatmul.mubr.bf16.gmra.mrb[0].mxu0 %v1263
    %v1379 = vpop.f32.mrb[0].mxu0
    %v1380 = vadd.f32 %v1340, %v1379
    %v1381 = vpop.f32.mrb[0].mxu0
    %v1382 = vpop.f32.mrb[0].mxu0
    %v1383 = vpop.f32.mrb[0].mxu0
    %1384 = vdwg.mxu0
    %v1385 = vmax.f32 %v1380, 0.0
    %v1386 = vpack.c.bf16 %v1385, %v1385
    %v1387 = vld [vmem:[%s7] sm:$0xff]
    %v1388 = vld [vmem:[%s7 + $0x8] sm:$0xff]
    %v1389 = vld [vmem:[%s7 + $0x10] sm:$0xff]
    %v1390 = vld [vmem:[%s7 + $0x18] sm:$0xff]
    %v1391 = vld [vmem:[%s7 + $0x20] sm:$0xff]
    %v1392 = vld [vmem:[%s7 + $0x28] sm:$0xff]
    %v1393 = vld [vmem:[%s7 + $0x30] sm:$0xff]
    %v1394 = vld [vmem:[%s7 + $0x38] sm:$0xff]
    %v1395 = vld [vmem:[%s7 + $0x40] sm:$0xff]
    %v1396 = vld [vmem:[%s7 + $0x48] sm:$0xff]
    %v1397 = vld [vmem:[%s7 + $0x50] sm:$0xff]
    %v1398 = vld [vmem:[%s7 + $0x58] sm:$0xff]
    %v1399 = vld [vmem:[%s7 + $0x60] sm:$0xff]
    %v1400 = vld [vmem:[%s7 + $0x68] sm:$0xff]
    %v1401 = vld [vmem:[%s7 + $0x70] sm:$0xff]
    %v1402 = vld [vmem:[%s7 + $0x78] sm:$0xff]
    %v1403 = vld [vmem:[%s8] sm:$0xf]
    %v1405 = vlaneseq
    %v1406 = vshrl.u32 %v1405, 7
    %v1407 = vsub.s32 0, %v1406
    %v1408 = vrot.slane %v1403, %v1407
    %v1409 = vlaneseq
    %v1410 = vshrl.u32 %v1409, 7
    %v1411 = vsub.s32 1, %v1410
    %v1412 = vrot.slane %v1403, %v1411
    %v1413 = vlaneseq
    %v1414 = vshrl.u32 %v1413, 7
    %v1415 = vsub.s32 2, %v1414
    %v1416 = vrot.slane %v1403, %v1415
    %v1417 = vlaneseq
    %v1418 = vshrl.u32 %v1417, 7
    %v1419 = vsub.s32 3, %v1418
    %v1420 = vrot.slane %v1403, %v1419
    %v1441 = vunpack.c.l.b16 %v1387
    %v1442 = vunpack.c.h.b16 %v1387
    %v1443 = vunpack.c.l.b16 %v1388
    %v1444 = vunpack.c.h.b16 %v1388
    %v1445 = vunpack.c.l.b16 %v1389
    %v1446 = vunpack.c.h.b16 %v1389
    %v1447 = vunpack.c.l.b16 %v1390
    %v1448 = vunpack.c.h.b16 %v1390
    %v1449 = vunpack.c.l.b16 %v1391
    %v1450 = vunpack.c.h.b16 %v1391
    %v1451 = vunpack.c.l.b16 %v1392
    %v1452 = vunpack.c.h.b16 %v1392
    %v1453 = vunpack.c.l.b16 %v1393
    %v1454 = vunpack.c.h.b16 %v1393
    %v1455 = vunpack.c.l.b16 %v1394
    %v1456 = vunpack.c.h.b16 %v1394
    %v1457 = vunpack.c.l.b16 %v1395
    %v1458 = vunpack.c.h.b16 %v1395
    %v1459 = vunpack.c.l.b16 %v1396
    %v1460 = vunpack.c.h.b16 %v1396
    %v1461 = vunpack.c.l.b16 %v1397
    %v1462 = vunpack.c.h.b16 %v1397
    %v1463 = vunpack.c.l.b16 %v1398
    %v1464 = vunpack.c.h.b16 %v1398
    %v1465 = vunpack.c.l.b16 %v1399
    %v1466 = vunpack.c.h.b16 %v1399
    %v1467 = vunpack.c.l.b16 %v1400
    %v1468 = vunpack.c.h.b16 %v1400
    %v1469 = vunpack.c.l.b16 %v1401
    %v1470 = vunpack.c.h.b16 %v1401
    %v1471 = vunpack.c.l.b16 %v1402
    %v1472 = vunpack.c.h.b16 %v1402
    %v1473 = vpack.c.b16 %v1445, %v1441
    %v1474 = vpack.c.b16 %v1446, %v1442
    %v1475 = vpack.c.b16 %v1447, %v1443
    %v1476 = vpack.c.b16 %v1448, %v1444
    %v1477 = vpack.c.b16 %v1453, %v1449
    %v1478 = vpack.c.b16 %v1454, %v1450
    %v1479 = vpack.c.b16 %v1455, %v1451
    %v1480 = vpack.c.b16 %v1456, %v1452
    %v1481 = vpack.c.b16 %v1461, %v1457
    %v1482 = vpack.c.b16 %v1462, %v1458
    %v1483 = vpack.c.b16 %v1463, %v1459
    %v1484 = vpack.c.b16 %v1464, %v1460
    %v1485 = vpack.c.b16 %v1469, %v1465
    %v1486 = vpack.c.b16 %v1470, %v1466
    %v1487 = vpack.c.b16 %v1471, %v1467
    %v1488 = vpack.c.b16 %v1472, %v1468
    %v1506 = vsel %vm436, %v1386, 0
    %1508 = vmatprep.subr.bf16.mxu0 %v1474
    %1509 = vmatpush1.bf16.msra.mxu0 %v1473
    %1510 = vmatprep.subr.bf16.mxu0 %v1478
    %1511 = vmatpush1.bf16.msra.mxu0 %v1477
    %1512 = vmatprep.subr.bf16.mxu0 %v1482
    %1513 = vmatpush1.bf16.msra.mxu0 %v1481
    %1514 = vmatprep.subr.bf16.mxu0 %v1486
    %1515 = vmatpush1.bf16.msra.mxu0 %v1485
    %1516 = vmatprep.subr.bf16.mxu0 0
    %1517 = vmatpush1.bf16.msra.mxu0 0
    %1518 = vmatprep.subr.bf16.mxu0 0
    %1519 = vmatpush1.bf16.msra.mxu0 0
    %1520 = vmatprep.subr.bf16.mxu0 0
    %1521 = vmatpush1.bf16.msra.mxu0 0
    %1522 = vmatprep.subr.bf16.mxu0 0
    %1523 = vmatpush1.bf16.msra.mxu0 0
    %1524 = vmatprep.subr.bf16.mxu0 0
    %1525 = vmatpush1.bf16.msra.mxu0 0
    %1526 = vmatprep.subr.bf16.mxu0 0
    %1527 = vmatpush1.bf16.msra.mxu0 0
    %1528 = vmatprep.subr.bf16.mxu0 0
    %1529 = vmatpush1.bf16.msra.mxu0 0
    %1530 = vmatprep.subr.bf16.mxu0 0
    %1531 = vmatpush1.bf16.msra.mxu0 0
    %1532 = vmatprep.subr.bf16.mxu0 0
    %1533 = vmatpush1.bf16.msra.mxu0 0
    %1534 = vmatprep.subr.bf16.mxu0 0
    %1535 = vmatpush1.bf16.msra.mxu0 0
    %1536 = vmatprep.subr.bf16.mxu0 0
    %1537 = vmatpush1.bf16.msra.mxu0 0
    %1538 = vmatprep.subr.bf16.mxu0 0
    %1539 = vmatpush1.bf16.msra.mxu0 0
    %1540 = vmatprep.mubr.bf16.mxu0 0
    %1541 = vmatmul.mubr.bf16.gmra.mrb[0].mxu0 %v1506
    %v1542 = vpop.f32.mrb[0].mxu0
    %v1543 = vadd.f32 %v1408, %v1542
    %v1544 = vpop.f32.mrb[0].mxu0
    %v1545 = vadd.f32 %v1412, %v1544
    %v1546 = vpop.f32.mrb[0].mxu0
    %v1547 = vpop.f32.mrb[0].mxu0
    %1548 = vdwg.mxu0
    %1549 = vmatprep.subr.bf16.mxu0 %v1476
    %1550 = vmatpush1.bf16.msra.mxu0 %v1475
    %1551 = vmatprep.subr.bf16.mxu0 %v1480
    %1552 = vmatpush1.bf16.msra.mxu0 %v1479
    %1553 = vmatprep.subr.bf16.mxu0 %v1484
    %1554 = vmatpush1.bf16.msra.mxu0 %v1483
    %1555 = vmatprep.subr.bf16.mxu0 %v1488
    %1556 = vmatpush1.bf16.msra.mxu0 %v1487
    %1557 = vmatprep.subr.bf16.mxu0 0
    %1558 = vmatpush1.bf16.msra.mxu0 0
    %1559 = vmatprep.subr.bf16.mxu0 0
    %1560 = vmatpush1.bf16.msra.mxu0 0
    %1561 = vmatprep.subr.bf16.mxu0 0
    %1562 = vmatpush1.bf16.msra.mxu0 0
    %1563 = vmatprep.subr.bf16.mxu0 0
    %1564 = vmatpush1.bf16.msra.mxu0 0
    %1565 = vmatprep.subr.bf16.mxu0 0
    %1566 = vmatpush1.bf16.msra.mxu0 0
    %1567 = vmatprep.subr.bf16.mxu0 0
    %1568 = vmatpush1.bf16.msra.mxu0 0
    %1569 = vmatprep.subr.bf16.mxu0 0
    %1570 = vmatpush1.bf16.msra.mxu0 0
    %1571 = vmatprep.subr.bf16.mxu0 0
    %1572 = vmatpush1.bf16.msra.mxu0 0
    %1573 = vmatprep.subr.bf16.mxu0 0
    %1574 = vmatpush1.bf16.msra.mxu0 0
    %1575 = vmatprep.subr.bf16.mxu0 0
    %1576 = vmatpush1.bf16.msra.mxu0 0
    %1577 = vmatprep.subr.bf16.mxu0 0
    %1578 = vmatpush1.bf16.msra.mxu0 0
    %1579 = vmatprep.subr.bf16.mxu0 0
    %1580 = vmatpush1.bf16.msra.mxu0 0
    %1581 = vmatprep.mubr.bf16.mxu0 0
    %1582 = vmatmul.mubr.bf16.gmra.mrb[0].mxu0 %v1506
    %v1583 = vpop.f32.mrb[0].mxu0
    %v1584 = vadd.f32 %v1416, %v1583
    %v1585 = vpop.f32.mrb[0].mxu0
    %v1586 = vadd.f32 %v1420, %v1585
    %v1587 = vpop.f32.mrb[0].mxu0
    %v1588 = vpop.f32.mrb[0].mxu0
    %1589 = vdwg.mxu0
    %v1590 = vmax.f32 %v1543, 0.0
    %v1591 = vmax.f32 %v1545, 0.0
    %v1592 = vmax.f32 %v1584, 0.0
    %v1593 = vmax.f32 %v1586, 0.0
    %v1594 = vpack.c.bf16 %v1590, %v1590
    %v1595 = vpack.c.bf16 %v1591, %v1591
    %v1596 = vpack.c.bf16 %v1592, %v1592
    %v1597 = vpack.c.bf16 %v1593, %v1593
    %v1598 = vld [vmem:[%s9] sm:$0xf]
    %v1599 = vld [vmem:[%s9 + $0x4] sm:$0xf]
    %v1600 = vld [vmem:[%s9 + $0x8] sm:$0xf]
    %v1601 = vld [vmem:[%s9 + $0xc] sm:$0xf]
    %v1602 = vld [vmem:[%s9 + $0x10] sm:$0xf]
    %v1603 = vld [vmem:[%s9 + $0x14] sm:$0xf]
    %v1604 = vld [vmem:[%s9 + $0x18] sm:$0xf]
    %v1605 = vld [vmem:[%s9 + $0x1c] sm:$0xf]
    %v1606 = vld [vmem:[%s9 + $0x20] sm:$0xf]
    %v1607 = vld [vmem:[%s9 + $0x24] sm:$0xf]
    %v1608 = vld [vmem:[%s9 + $0x28] sm:$0xf]
    %v1609 = vld [vmem:[%s9 + $0x2c] sm:$0xf]
    %v1610 = vld [vmem:[%s9 + $0x30] sm:$0xf]
    %v1611 = vld [vmem:[%s9 + $0x34] sm:$0xf]
    %v1612 = vld [vmem:[%s9 + $0x38] sm:$0xf]
    %v1613 = vld [vmem:[%s9 + $0x3c] sm:$0xf]
    %v1614 = vld [vmem:[%s9 + $0x40] sm:$0xf]
    %v1615 = vld [vmem:[%s9 + $0x44] sm:$0xf]
    %v1616 = vld [vmem:[%s9 + $0x48] sm:$0xf]
    %v1617 = vld [vmem:[%s9 + $0x4c] sm:$0xf]
    %v1618 = vld [vmem:[%s9 + $0x50] sm:$0xf]
    %v1619 = vld [vmem:[%s9 + $0x54] sm:$0xf]
    %v1620 = vld [vmem:[%s9 + $0x58] sm:$0xf]
    %v1621 = vld [vmem:[%s9 + $0x5c] sm:$0xf]
    %v1622 = vld [vmem:[%s9 + $0x60] sm:$0xf]
    %v1623 = vld [vmem:[%s9 + $0x64] sm:$0xf]
    %v1624 = vld [vmem:[%s9 + $0x68] sm:$0xf]
    %v1625 = vld [vmem:[%s9 + $0x6c] sm:$0xf]
    %v1626 = vld [vmem:[%s9 + $0x70] sm:$0xf]
    %v1627 = vld [vmem:[%s9 + $0x74] sm:$0xf]
    %v1628 = vld [vmem:[%s9 + $0x78] sm:$0xf]
    %v1629 = vld [vmem:[%s9 + $0x7c] sm:$0xf]
    %v1630 = vld [vmem:[%s9 + $0x80] sm:$0xf]
    %v1631 = vld [vmem:[%s9 + $0x84] sm:$0xf]
    %v1632 = vld [vmem:[%s9 + $0x88] sm:$0xf]
    %v1633 = vld [vmem:[%s9 + $0x8c] sm:$0xf]
    %v1634 = vld [vmem:[%s9 + $0x90] sm:$0xf]
    %v1635 = vld [vmem:[%s9 + $0x94] sm:$0xf]
    %v1636 = vld [vmem:[%s9 + $0x98] sm:$0xf]
    %v1637 = vld [vmem:[%s9 + $0x9c] sm:$0xf]
    %v1638 = vld [vmem:[%s9 + $0xa0] sm:$0xf]
    %v1639 = vld [vmem:[%s9 + $0xa4] sm:$0xf]
    %v1640 = vld [vmem:[%s9 + $0xa8] sm:$0xf]
    %v1641 = vld [vmem:[%s9 + $0xac] sm:$0xf]
    %v1642 = vld [vmem:[%s9 + $0xb0] sm:$0xf]
    %v1643 = vld [vmem:[%s9 + $0xb4] sm:$0xf]
    %v1644 = vld [vmem:[%s9 + $0xb8] sm:$0xf]
    %v1645 = vld [vmem:[%s9 + $0xbc] sm:$0xf]
    %v1646 = vld [vmem:[%s9 + $0xc0] sm:$0xf]
    %v1647 = vld [vmem:[%s9 + $0xc4] sm:$0xf]
    %v1648 = vld [vmem:[%s9 + $0xc8] sm:$0xf]
    %v1649 = vld [vmem:[%s9 + $0xcc] sm:$0xf]
    %v1650 = vld [vmem:[%s9 + $0xd0] sm:$0xf]
    %v1651 = vld [vmem:[%s9 + $0xd4] sm:$0xf]
    %v1652 = vld [vmem:[%s9 + $0xd8] sm:$0xf]
    %v1653 = vld [vmem:[%s9 + $0xdc] sm:$0xf]
    %v1654 = vld [vmem:[%s9 + $0xe0] sm:$0xf]
    %v1655 = vld [vmem:[%s9 + $0xe4] sm:$0xf]
    %v1656 = vld [vmem:[%s9 + $0xe8] sm:$0xf]
    %v1657 = vld [vmem:[%s9 + $0xec] sm:$0xf]
    %v1658 = vld [vmem:[%s9 + $0xf0] sm:$0xf]
    %v1659 = vld [vmem:[%s9 + $0xf4] sm:$0xf]
    %v1660 = vld [vmem:[%s9 + $0xf8] sm:$0xf]
    %v1661 = vld [vmem:[%s9 + $0xfc] sm:$0xf]
    %v1662 = vld [vmem:[%s10] sm:$0x1]
    %v1664 = vlaneseq
    %v1665 = vshrl.u32 %v1664, 7
    %v1666 = vsub.s32 0, %v1665
    %v1667 = vrot.slane %v1662, %v1666
    %v1733 = vunpack.c.l.b16 %v1598
    %v1734 = vunpack.c.l.b16 %v1599
    %v1735 = vunpack.c.l.b16 %v1600
    %v1736 = vunpack.c.l.b16 %v1601
    %v1737 = vunpack.c.l.b16 %v1602
    %v1738 = vunpack.c.l.b16 %v1603
    %v1739 = vunpack.c.l.b16 %v1604
    %v1740 = vunpack.c.l.b16 %v1605
    %v1741 = vunpack.c.l.b16 %v1606
    %v1742 = vunpack.c.l.b16 %v1607
    %v1743 = vunpack.c.l.b16 %v1608
    %v1744 = vunpack.c.l.b16 %v1609
    %v1745 = vunpack.c.l.b16 %v1610
    %v1746 = vunpack.c.l.b16 %v1611
    %v1747 = vunpack.c.l.b16 %v1612
    %v1748 = vunpack.c.l.b16 %v1613
    %v1749 = vunpack.c.l.b16 %v1614
    %v1750 = vunpack.c.l.b16 %v1615
    %v1751 = vunpack.c.l.b16 %v1616
    %v1752 = vunpack.c.l.b16 %v1617
    %v1753 = vunpack.c.l.b16 %v1618
    %v1754 = vunpack.c.l.b16 %v1619
    %v1755 = vunpack.c.l.b16 %v1620
    %v1756 = vunpack.c.l.b16 %v1621
    %v1757 = vunpack.c.l.b16 %v1622
    %v1758 = vunpack.c.l.b16 %v1623
    %v1759 = vunpack.c.l.b16 %v1624
    %v1760 = vunpack.c.l.b16 %v1625
    %v1761 = vunpack.c.l.b16 %v1626
    %v1762 = vunpack.c.l.b16 %v1627
    %v1763 = vunpack.c.l.b16 %v1628
    %v1764 = vunpack.c.l.b16 %v1629
    %v1765 = vunpack.c.l.b16 %v1630
    %v1766 = vunpack.c.l.b16 %v1631
    %v1767 = vunpack.c.l.b16 %v1632
    %v1768 = vunpack.c.l.b16 %v1633
    %v1769 = vunpack.c.l.b16 %v1634
    %v1770 = vunpack.c.l.b16 %v1635
    %v1771 = vunpack.c.l.b16 %v1636
    %v1772 = vunpack.c.l.b16 %v1637
    %v1773 = vunpack.c.l.b16 %v1638
    %v1774 = vunpack.c.l.b16 %v1639
    %v1775 = vunpack.c.l.b16 %v1640
    %v1776 = vunpack.c.l.b16 %v1641
    %v1777 = vunpack.c.l.b16 %v1642
    %v1778 = vunpack.c.l.b16 %v1643
    %v1779 = vunpack.c.l.b16 %v1644
    %v1780 = vunpack.c.l.b16 %v1645
    %v1781 = vunpack.c.l.b16 %v1646
    %v1782 = vunpack.c.l.b16 %v1647
    %v1783 = vunpack.c.l.b16 %v1648
    %v1784 = vunpack.c.l.b16 %v1649
    %v1785 = vunpack.c.l.b16 %v1650
    %v1786 = vunpack.c.l.b16 %v1651
    %v1787 = vunpack.c.l.b16 %v1652
    %v1788 = vunpack.c.l.b16 %v1653
    %v1789 = vunpack.c.l.b16 %v1654
    %v1790 = vunpack.c.l.b16 %v1655
    %v1791 = vunpack.c.l.b16 %v1656
    %v1792 = vunpack.c.l.b16 %v1657
    %v1793 = vunpack.c.l.b16 %v1658
    %v1794 = vunpack.c.l.b16 %v1659
    %v1795 = vunpack.c.l.b16 %v1660
    %v1796 = vunpack.c.l.b16 %v1661
    %v1797 = vpack.c.b16 %v1734, %v1733
    %v1798 = vpack.c.b16 %v1736, %v1735
    %v1799 = vpack.c.b16 %v1738, %v1737
    %v1800 = vpack.c.b16 %v1740, %v1739
    %v1801 = vpack.c.b16 %v1742, %v1741
    %v1802 = vpack.c.b16 %v1744, %v1743
    %v1803 = vpack.c.b16 %v1746, %v1745
    %v1804 = vpack.c.b16 %v1748, %v1747
    %v1805 = vpack.c.b16 %v1750, %v1749
    %v1806 = vpack.c.b16 %v1752, %v1751
    %v1807 = vpack.c.b16 %v1754, %v1753
    %v1808 = vpack.c.b16 %v1756, %v1755
    %v1809 = vpack.c.b16 %v1758, %v1757
    %v1810 = vpack.c.b16 %v1760, %v1759
    %v1811 = vpack.c.b16 %v1762, %v1761
    %v1812 = vpack.c.b16 %v1764, %v1763
    %v1813 = vpack.c.b16 %v1766, %v1765
    %v1814 = vpack.c.b16 %v1768, %v1767
    %v1815 = vpack.c.b16 %v1770, %v1769
    %v1816 = vpack.c.b16 %v1772, %v1771
    %v1817 = vpack.c.b16 %v1774, %v1773
    %v1818 = vpack.c.b16 %v1776, %v1775
    %v1819 = vpack.c.b16 %v1778, %v1777
    %v1820 = vpack.c.b16 %v1780, %v1779
    %v1821 = vpack.c.b16 %v1782, %v1781
    %v1822 = vpack.c.b16 %v1784, %v1783
    %v1823 = vpack.c.b16 %v1786, %v1785
    %v1824 = vpack.c.b16 %v1788, %v1787
    %v1825 = vpack.c.b16 %v1790, %v1789
    %v1826 = vpack.c.b16 %v1792, %v1791
    %v1827 = vpack.c.b16 %v1794, %v1793
    %v1828 = vpack.c.b16 %v1796, %v1795
    %1861 = vmatprep.subr.bf16.mxu0 0
    %1862 = vmatpush1.bf16.msra.mxu0 %v1797
    %1863 = vmatprep.subr.bf16.mxu0 0
    %1864 = vmatpush1.bf16.msra.mxu0 %v1798
    %1865 = vmatprep.subr.bf16.mxu0 0
    %1866 = vmatpush1.bf16.msra.mxu0 %v1799
    %1867 = vmatprep.subr.bf16.mxu0 0
    %1868 = vmatpush1.bf16.msra.mxu0 %v1800
    %1869 = vmatprep.subr.bf16.mxu0 0
    %1870 = vmatpush1.bf16.msra.mxu0 %v1801
    %1871 = vmatprep.subr.bf16.mxu0 0
    %1872 = vmatpush1.bf16.msra.mxu0 %v1802
    %1873 = vmatprep.subr.bf16.mxu0 0
    %1874 = vmatpush1.bf16.msra.mxu0 %v1803
    %1875 = vmatprep.subr.bf16.mxu0 0
    %1876 = vmatpush1.bf16.msra.mxu0 %v1804
    %1877 = vmatprep.subr.bf16.mxu0 0
    %1878 = vmatpush1.bf16.msra.mxu0 %v1805
    %1879 = vmatprep.subr.bf16.mxu0 0
    %1880 = vmatpush1.bf16.msra.mxu0 %v1806
    %1881 = vmatprep.subr.bf16.mxu0 0
    %1882 = vmatpush1.bf16.msra.mxu0 %v1807
    %1883 = vmatprep.subr.bf16.mxu0 0
    %1884 = vmatpush1.bf16.msra.mxu0 %v1808
    %1885 = vmatprep.subr.bf16.mxu0 0
    %1886 = vmatpush1.bf16.msra.mxu0 %v1809
    %1887 = vmatprep.subr.bf16.mxu0 0
    %1888 = vmatpush1.bf16.msra.mxu0 %v1810
    %1889 = vmatprep.subr.bf16.mxu0 0
    %1890 = vmatpush1.bf16.msra.mxu0 %v1811
    %1891 = vmatprep.subr.bf16.mxu0 0
    %1892 = vmatpush1.bf16.msra.mxu0 %v1812
    %1893 = vmatprep.mubr.bf16.mxu0 %v1595
    %1894 = vmatmul.mubr.bf16.gmra.mrb[0].mxu0 %v1594
    %v1895 = vpop.f32.mrb[0].mxu0
    %v1896 = vadd.f32 %v1667, %v1895
    %v1897 = vpop.f32.mrb[0].mxu0
    %v1898 = vpop.f32.mrb[0].mxu0
    %v1899 = vpop.f32.mrb[0].mxu0
    %1900 = vdwg.mxu0
    %1901 = vmatprep.subr.bf16.mxu0 0
    %1902 = vmatpush1.bf16.msra.mxu0 %v1813
    %1903 = vmatprep.subr.bf16.mxu0 0
    %1904 = vmatpush1.bf16.msra.mxu0 %v1814
    %1905 = vmatprep.subr.bf16.mxu0 0
    %1906 = vmatpush1.bf16.msra.mxu0 %v1815
    %1907 = vmatprep.subr.bf16.mxu0 0
    %1908 = vmatpush1.bf16.msra.mxu0 %v1816
    %1909 = vmatprep.subr.bf16.mxu0 0
    %1910 = vmatpush1.bf16.msra.mxu0 %v1817
    %1911 = vmatprep.subr.bf16.mxu0 0
    %1912 = vmatpush1.bf16.msra.mxu0 %v1818
    %1913 = vmatprep.subr.bf16.mxu0 0
    %1914 = vmatpush1.bf16.msra.mxu0 %v1819
    %1915 = vmatprep.subr.bf16.mxu0 0
    %1916 = vmatpush1.bf16.msra.mxu0 %v1820
    %1917 = vmatprep.subr.bf16.mxu0 0
    %1918 = vmatpush1.bf16.msra.mxu0 %v1821
    %1919 = vmatprep.subr.bf16.mxu0 0
    %1920 = vmatpush1.bf16.msra.mxu0 %v1822
    %1921 = vmatprep.subr.bf16.mxu0 0
    %1922 = vmatpush1.bf16.msra.mxu0 %v1823
    %1923 = vmatprep.subr.bf16.mxu0 0
    %1924 = vmatpush1.bf16.msra.mxu0 %v1824
    %1925 = vmatprep.subr.bf16.mxu0 0
    %1926 = vmatpush1.bf16.msra.mxu0 %v1825
    %1927 = vmatprep.subr.bf16.mxu0 0
    %1928 = vmatpush1.bf16.msra.mxu0 %v1826
    %1929 = vmatprep.subr.bf16.mxu0 0
    %1930 = vmatpush1.bf16.msra.mxu0 %v1827
    %1931 = vmatprep.subr.bf16.mxu0 0
    %1932 = vmatpush1.bf16.msra.mxu0 %v1828
    %1933 = vmatprep.mubr.bf16.mxu0 %v1597
    %1934 = vmatmul.mubr.bf16.gmra.mrb[0].mxu0 %v1596
    %v1935 = vpop.f32.mrb[0].mxu0
    %v1936 = vadd.f32 %v1896, %v1935
    %v1937 = vpop.f32.mrb[0].mxu0
    %v1938 = vpop.f32.mrb[0].mxu0
    %v1939 = vpop.f32.mrb[0].mxu0
    %1940 = vdwg.mxu0
    %1941 = vst [vmem:[#allocation2] sm:$0x3] %v1936
    // Predicated region
    $region46: #{dqn_forward.1} parent=1 // pred_check
      _
    $region47: #{dqn_forward.1} parent=1 // pred_check_branch
      %1943 = sbr.rel (0) target = $region49
    $region48: #{dqn_forward.1} parent=1 // pred_region
      %s1945 = ssub.s32 32, 32
      %1946 = vsyncadd [#allocation3], %s1945
      %s1948 = sshll.u32 [#allocation2], 4
      %s1949 = int_to_ptr.vmem [resolvable:$true] %s1948
      %1951 = dma.vmem_to_hbm [thread:$0]  %s1949, 32, %s11, [#allocation3]
    $region49: #{dqn_forward.1} parent=1 // pred_fallthru
      _
    // Predicated region
    $region50: #{dqn_forward.1} parent=1 // pred_check
      _
    $region51: #{dqn_forward.1} parent=1 // pred_check_branch
      %1953 = sbr.rel (0) target = $region53
    $region52: #{dqn_forward.1} parent=1 // pred_region
      %1954 = dma.done [#allocation3], 32
    $region53: #{dqn_forward.1} parent=1 // pred_fallthru
      _
    %1955 = vsyncpa [#allocation3], 1

</llo_original>
